<compile_context>
chip_gen: v7x
topology: tpu7x:2x2x1
jax: 0.10.0
libtpu: 0.0.40
codegen_flags: <defaults>
</compile_context>

<pallas_src>
import functools

import jax
import jax.numpy as jnp
from jax.experimental import pallas as pl
from jax.experimental.pallas import tpu as pltpu


def _round_up(x, m):
    return ((x + m - 1) // m) * m


# ----------------------------- Pallas kernels ------------------------------ #

def conv_matmul_stats_kernel(x_ref, w_ref, y_ref, psum_ref, pssq_ref):
    """One (image, row-tile) step of the im2col conv matmul plus the per-tile
    partial BatchNorm reduction.

    x_ref : (1, tile1, K_p)  bf16   im2col patch rows
    w_ref : (K_p, Cout_p)    bf16   folded conv weights (resident)
    y_ref : (1, tile1, Cout_p) bf16 conv output tile (bf16 intermediate -> half HBM)
    psum_ref / pssq_ref : (1, 8, Cout_p) f32 partial sum / sum-of-squares
    (stats come from the f32 accumulator, before the bf16 rounding)."""
    x = x_ref[0]                                                    # (tile1, K_p)
    y = jnp.dot(x, w_ref[...], preferred_element_type=jnp.float32)  # MXU, f32 acc
    y_ref[0] = y.astype(y_ref.dtype)

    s = jnp.sum(y, axis=0, keepdims=True)
    q = jnp.sum(y * y, axis=0, keepdims=True)
    # Replicate across the 8 sublanes so the stats block stays (8,128)-aligned;
    # the host glue reads sublane 0 of each block.
    psum_ref[0] = jnp.broadcast_to(s, psum_ref.shape[1:])
    pssq_ref[0] = jnp.broadcast_to(q, pssq_ref.shape[1:])


def bn_relu_nchw_kernel(y_ref, scale_ref, shift_ref, o_ref):
    """Fused BN affine (precomputed per-channel scale/shift) + ReLU, writing the
    result already transposed into the NCHW output slab.

    y_ref : (1, tile2, Cout_p) bf16
    o_ref : (1, Cout_p8, tile2) f32   (channels on the sublane axis)"""
    y = y_ref[0].astype(jnp.float32)                                # (tile2, Cout_p)
    z = jnp.maximum(y * scale_ref[...] + shift_ref[...], 0.0)
    zt = jnp.transpose(z)                                           # XLU, ~free
    o_ref[0] = zt[: o_ref.shape[1], :]


# ------------------------- generation-aware sizing ------------------------- #

def _tpu_vmem_capacity_bytes():
    try:
        cap = int(pltpu.get_tpu_info().vmem_capacity_bytes)
        if cap > 0:
            return cap
    except Exception:
        pass
    return 64 * 1024 * 1024  # conservative fallback (sized for the 64 MiB v7x part)


def _plan(n, hw, k_p, cout_p, cout_p8):
    """Pick per-pass tiles and vmem limits from the actual part's VMEM size."""
    cap = _tpu_vmem_capacity_bytes()
    budget = max(int(cap * 0.45), 8 * 1024 * 1024)   # ~28 MiB v7x, ~57 MiB v5e/v6e

    # Pass 1 streams bf16 x (K_p wide) in + bf16 y out; weights stay resident.
    per_row1 = 2 * (k_p * 2 + cout_p * 2)                         # double-buffered
    fixed1 = 2 * k_p * cout_p * 2 + 2 * 2 * 8 * cout_p * 4        # weights + stats
    avail1 = max(budget - fixed1, per_row1 * 128)
    tile1 = max(128, (avail1 // per_row1) // 128 * 128)
    tile1 = min(tile1, _round_up(hw, 128))
    # v7x megacore: keep >= 2 grid steps when a single image would otherwise
    # collapse the whole grid to one step.
    if n == 1 and hw > 128 and tile1 >= _round_up(hw, 128):
        tile1 = _round_up((hw + 1) // 2, 128)
    hw_p = _round_up(hw, tile1)

    # Pass 2 only streams the M x Cout tensors -> can afford a bigger tile.
    per_row2 = 2 * (cout_p * 2 + cout_p8 * 4)
    tile2 = tile1
    if hw_p * per_row2 + 4 * cout_p * 4 <= budget and (n >= 2 or hw_p == tile1):
        tile2 = hw_p

    usage1 = fixed1 + tile1 * per_row1
    usage2 = tile2 * per_row2 + 4 * cout_p * 4

    def _limit(usage):
        want = max(32 * 1024 * 1024, int(usage * 1.25) + 4 * 1024 * 1024)
        return int(min(want, cap * 3 // 4))

    return tile1, tile2, hw_p, _limit(usage1), _limit(usage2)


# ------------------------------ Host wrapper ------------------------------- #

def conv_bn_relu(x_nchw, weight, bias, gamma, beta, *, stride, padding, eps=1e-5,
                 matmul_dtype=jnp.bfloat16):
    """Forward pass of ConvBNReLU (BatchNorm in training mode: batch statistics).

    x_nchw : [N, Cin, H, W] float32
    weight : [Cout, Cin, KH, KW] float32 (PyTorch conv weight layout)
    bias   : [Cout]  (cancels exactly under training-mode BN; see below)
    gamma, beta : [Cout] BN affine parameters
    returns: [N, Cout, OH, OW] float32
    """
    n, cin, h, w = x_nchw.shape
    cout, _, kh, kw = weight.shape
    oh = (h + 2 * padding - kh) // stride + 1
    ow = (w + 2 * padding - kw) // stride + 1

    hw = oh * ow
    m_true = n * hw
    k = kh * kw * cin
    k_p = _round_up(k, 128)          # lane-dense K
    cout_p = _round_up(cout, 128)    # lane-dense Cout for the matmul passes
    cout_p8 = _round_up(cout, 8)     # sublane-dense Cout for the NCHW output slab

    tile1, tile2, hw_p, vlim1, vlim2 = _plan(n, hw, k_p, cout_p, cout_p8)
    nt1 = hw_p // tile1
    nt2 = hw_p // tile2

    # --- glue: im2col in bf16 (early cast halves glue HBM traffic) ----------
    x_nhwc = jnp.transpose(x_nchw.astype(matmul_dtype), (0, 2, 3, 1))
    x_sp = jnp.pad(x_nhwc, ((0, 0), (padding, padding), (padding, padding), (0, 0)))
    patches = []
    for dy in range(kh):
        for dx in range(kw):
            patches.append(
                x_sp[:, dy:dy + (oh - 1) * stride + 1:stride,
                        dx:dx + (ow - 1) * stride + 1:stride, :])
    patches = jnp.concatenate(patches, axis=-1)            # [N, OH, OW, KH*KW*Cin]
    x_mat3 = patches.reshape(n, hw, k)
    # Per-image row padding + K lane padding. Zero rows contribute exactly 0 to
    # the BN stats because the conv bias is *not* added in pass 1.
    x_mat3 = jnp.pad(x_mat3, ((0, 0), (0, hw_p - hw), (0, k_p - k)))

    # weight [Cout,Cin,KH,KW] -> [KH,KW,Cin,Cout] -> [K, Cout] (matches patch order).
    w_mat = jnp.transpose(weight, (2, 3, 1, 0)).reshape(k, cout).astype(jnp.float32)
    w_mat = jnp.pad(w_mat, ((0, k_p - k), (0, cout_p - cout))).astype(matmul_dtype)

    # --- Pallas pass 1: conv matmul (bf16 out) + per-tile BN partial stats ---
    y3, psum, pssq = pl.pallas_call(
        conv_matmul_stats_kernel,
        out_shape=(
            jax.ShapeDtypeStruct((n, hw_p, cout_p), matmul_dtype),
            jax.ShapeDtypeStruct((n, nt1 * 8, cout_p), jnp.float32),
            jax.ShapeDtypeStruct((n, nt1 * 8, cout_p), jnp.float32),
        ),
        grid_spec=pltpu.PrefetchScalarGridSpec(
            num_scalar_prefetch=0,
            grid=(n, nt1),
            in_specs=[
                pl.BlockSpec((1, tile1, k_p), lambda b, i: (b, i, 0)),
                pl.BlockSpec((k_p, cout_p), lambda b, i: (0, 0)),
            ],
            out_specs=[
                pl.BlockSpec((1, tile1, cout_p), lambda b, i: (b, i, 0)),
                pl.BlockSpec((1, 8, cout_p), lambda b, i: (b, i, 0)),
                pl.BlockSpec((1, 8, cout_p), lambda b, i: (b, i, 0)),
            ],
        ),
        compiler_params=pltpu.CompilerParams(
            dimension_semantics=("parallel", "parallel"),
            vmem_limit_bytes=vlim1),
    )(x_mat3, w_mat)

    # --- glue: combine partial stats -> per-channel scale/shift --------------
    ch_sum = psum.reshape(n, nt1, 8, cout_p)[:, :, 0, :].sum(axis=(0, 1))   # [Cout_p]
    ch_ssq = pssq.reshape(n, nt1, 8, cout_p)[:, :, 0, :].sum(axis=(0, 1))   # [Cout_p]
    mean = ch_sum / float(m_true)
    # E[y^2] - E[y]^2 in f32 can cancel when |mean| >> std; the max(.,0) guard is
    # enough at this tolerance (see review note) — use shifted sums if BN accuracy
    # ever needs to be tighter.
    var = jnp.maximum(ch_ssq / float(m_true) - mean * mean, 0.0)
    inv_std = jax.lax.rsqrt(var + eps)
    gamma_p = jnp.pad(gamma.astype(jnp.float32), (0, cout_p - cout))
    beta_p = jnp.pad(beta.astype(jnp.float32), (0, cout_p - cout))
    # Training-mode BN subtracts the batch mean, so the constant conv bias cancels
    # exactly and never touches the data path:
    #   gamma*(y0+b - mean(y0+b))*inv_std + beta == gamma*(y0 - mean(y0))*inv_std + beta
    del bias
    scale = (gamma_p * inv_std).reshape(1, cout_p)
    shift = (beta_p - mean * gamma_p * inv_std).reshape(1, cout_p)

    # --- Pallas pass 2: BN affine + ReLU, written directly in NCHW layout ----
    out3 = pl.pallas_call(
        bn_relu_nchw_kernel,
        out_shape=jax.ShapeDtypeStruct((n, cout_p8, hw_p), jnp.float32),
        grid_spec=pltpu.PrefetchScalarGridSpec(
            num_scalar_prefetch=0,
            grid=(n, nt2),
            in_specs=[
                pl.BlockSpec((1, tile2, cout_p), lambda b, i: (b, i, 0)),
                pl.BlockSpec((1, cout_p), lambda b, i: (0, 0)),
                pl.BlockSpec((1, cout_p), lambda b, i: (0, 0)),
            ],
            out_specs=pl.BlockSpec((1, cout_p8, tile2), lambda b, i: (b, 0, i)),
        ),
        compiler_params=pltpu.CompilerParams(
            dimension_semantics=("parallel", "parallel"),
            vmem_limit_bytes=vlim2),
    )(y3, scale, shift)

    # Drop the (small) channel/row padding; no transpose needed — the kernel
    # already wrote NCHW. For typical shapes (cout % 8 == 0 and hw % tile == 0)
    # these slices are no-ops.
    out = out3[:, :cout, :hw].reshape(n, cout, oh, ow)
    return out


# ------------------------------ Reference ---------------------------------- #

def conv_bn_relu_ref(x_nchw, weight, bias, gamma, beta, *, stride, padding, eps=1e-5):
    y = jax.lax.conv_general_dilated(
        x_nchw, weight, window_strides=(stride, stride),
        padding=[(padding, padding), (padding, padding)],
        dimension_numbers=("NCHW", "OIHW", "NCHW"))
    y = y + bias.reshape(1, -1, 1, 1)
    mean = jnp.mean(y, axis=(0, 2, 3), keepdims=True)
    var = jnp.mean((y - mean) ** 2, axis=(0, 2, 3), keepdims=True)
    y = (y - mean) * jax.lax.rsqrt(var + eps)
    y = y * gamma.reshape(1, -1, 1, 1) + beta.reshape(1, -1, 1, 1)
    return jnp.maximum(y, 0.0)


# --------------------------------- main ------------------------------------ #

if __name__ == "__main__":
    # Module hyperparameters (small, consistent with ConvBNReLU.__init__)
    N, CIN, H, W = 2, 4, 16, 16
    COUT, KSIZE, STRIDE, PAD = 8, 3, 1, 1

    key = jax.random.PRNGKey(0)
    k_x, k_w, k_b, k_g, k_be = jax.random.split(key, 5)

    x = jax.random.normal(k_x, (N, CIN, H, W), dtype=jnp.float32)
    weight = 0.1 * jax.random.normal(k_w, (COUT, CIN, KSIZE, KSIZE), dtype=jnp.float32)
    bias = 0.1 * jax.random.normal(k_b, (COUT,), dtype=jnp.float32)
    gamma = 1.0 + 0.1 * jax.random.normal(k_g, (COUT,), dtype=jnp.float32)
    beta = 0.1 * jax.random.normal(k_be, (COUT,), dtype=jnp.float32)

    fwd = jax.jit(functools.partial(conv_bn_relu, stride=STRIDE, padding=PAD))
    out = fwd(x, weight, bias, gamma, beta)
    out = jax.block_until_ready(out)

    ref = conv_bn_relu_ref(x, weight, bias, gamma, beta, stride=STRIDE, padding=PAD)
    assert out.shape == (N, COUT, H, W), out.shape
    # bf16 matmul inputs *and* a bf16 intermediate: BN renormalizes the output to
    # O(1), so the bf16 rounding noise (few e-3) sits well inside this tolerance
    # while still catching any structural / ordering bug.
    err = float(jnp.max(jnp.abs(out - ref)))
    assert jnp.allclose(out, ref, atol=5e-2, rtol=5e-2), err

    print("KERNEL_OK")
</pallas_src>

<mosaic_0001>
module attributes {stable_mosaic.version = 11 : i64} {
  func.func @conv_matmul_stats_kernel(%arg0: i32, %arg1: i32, %arg2: memref<1x256x128xbf16, #tpu.memory_space<vmem>>, %arg3: memref<128x128xbf16, #tpu.memory_space<vmem>>, %arg4: memref<1x256x128xbf16, #tpu.memory_space<vmem>>, %arg5: memref<1x8x128xf32, #tpu.memory_space<vmem>>, %arg6: memref<1x8x128xf32, #tpu.memory_space<vmem>>) attributes {dimension_semantics = [#tpu.dimension_semantics<parallel>, #tpu.dimension_semantics<parallel>], iteration_bounds = array<i64: 2, 1>, scalar_prefetch = 0 : i64, scratch_operands = 0 : i64, tpu.core_type = #tpu.core_type<tc>, window_params = [{transform_indices = @transform_0, window_bounds = array<i64: 1, 256, 128>}, {pipeline_mode = #tpu.pipeline_mode<synchronous>, transform_indices = @transform_1, window_bounds = array<i64: 128, 128>}, {transform_indices = @transform_2, window_bounds = array<i64: 1, 256, 128>}, {transform_indices = @transform_3, window_bounds = array<i64: 1, 8, 128>}, {transform_indices = @transform_4, window_bounds = array<i64: 1, 8, 128>}]} {
    %c0 = arith.constant 0 : index
    %c0_0 = arith.constant 0 : index
    %c0_1 = arith.constant 0 : index
    %0 = vector.load %arg2[%c0, %c0_0, %c0_1] : memref<1x256x128xbf16, #tpu.memory_space<vmem>>, vector<1x256x128xbf16>
    %1 = vector.shape_cast %0 : vector<1x256x128xbf16> to vector<256x128xbf16>
    %c0_2 = arith.constant 0 : index
    %c0_3 = arith.constant 0 : index
    %2 = vector.load %arg3[%c0_2, %c0_3] : memref<128x128xbf16, #tpu.memory_space<vmem>>, vector<128x128xbf16>
    %cst = arith.constant dense<0.000000e+00> : vector<256x128xf32>
    %3 = tpu.matmul %1, %2, %cst {dimension_numbers = #tpu.dot_dimension_numbers<[1], [0], [0], [1], [0, 0, 1, 1], [], []>} : vector<256x128xbf16>, vector<128x128xbf16>, vector<256x128xf32> -> vector<256x128xf32>
    %4 = arith.truncf %3 : vector<256x128xf32> to vector<256x128xbf16>
    %c0_4 = arith.constant 0 : index
    %c0_5 = arith.constant 0 : index
    %c0_6 = arith.constant 0 : index
    %5 = vector.load %arg4[%c0_4, %c0_5, %c0_6] : memref<1x256x128xbf16, #tpu.memory_space<vmem>>, vector<1x256x128xbf16>
    %6 = vector.shape_cast %5 : vector<1x256x128xbf16> to vector<256x128xbf16>
    %7 = vector.shape_cast %4 : vector<256x128xbf16> to vector<1x256x128xbf16>
    tpu.vector_store %arg4[%c0_4, %c0_5, %c0_6], %7 {strides = array<i32>} : memref<1x256x128xbf16, #tpu.memory_space<vmem>>, vector<1x256x128xbf16>,
    %cst_7 = arith.constant dense<0.000000e+00> : vector<128xf32>
    %8 = vector.multi_reduction <add>, %3, %cst_7 [0] : vector<256x128xf32> to vector<128xf32>
    %9 = vector.shape_cast %8 : vector<128xf32> to vector<1x128xf32>
    %10 = arith.mulf %3, %3 : vector<256x128xf32>
    %cst_8 = arith.constant dense<0.000000e+00> : vector<128xf32>
    %11 = vector.multi_reduction <add>, %10, %cst_8 [0] : vector<256x128xf32> to vector<128xf32>
    %12 = vector.shape_cast %11 : vector<128xf32> to vector<1x128xf32>
    %13 = vector.shape_cast %9 : vector<1x128xf32> to vector<1x128xf32>
    %14 = vector.broadcast %13 : vector<1x128xf32> to vector<8x128xf32>
    %c0_9 = arith.constant 0 : index
    %c0_10 = arith.constant 0 : index
    %c0_11 = arith.constant 0 : index
    %15 = vector.load %arg5[%c0_9, %c0_10, %c0_11] : memref<1x8x128xf32, #tpu.memory_space<vmem>>, vector<1x8x128xf32>
    %16 = vector.shape_cast %15 : vector<1x8x128xf32> to vector<8x128xf32>
    %17 = vector.shape_cast %14 : vector<8x128xf32> to vector<1x8x128xf32>
    tpu.vector_store %arg5[%c0_9, %c0_10, %c0_11], %17 {strides = array<i32>} : memref<1x8x128xf32, #tpu.memory_space<vmem>>, vector<1x8x128xf32>,
    %18 = vector.shape_cast %12 : vector<1x128xf32> to vector<1x128xf32>
    %19 = vector.broadcast %18 : vector<1x128xf32> to vector<8x128xf32>
    %c0_12 = arith.constant 0 : index
    %c0_13 = arith.constant 0 : index
    %c0_14 = arith.constant 0 : index
    %20 = vector.load %arg6[%c0_12, %c0_13, %c0_14] : memref<1x8x128xf32, #tpu.memory_space<vmem>>, vector<1x8x128xf32>
    %21 = vector.shape_cast %20 : vector<1x8x128xf32> to vector<8x128xf32>
    %22 = vector.shape_cast %19 : vector<8x128xf32> to vector<1x8x128xf32>
    tpu.vector_store %arg6[%c0_12, %c0_13, %c0_14], %22 {strides = array<i32>} : memref<1x8x128xf32, #tpu.memory_space<vmem>>, vector<1x8x128xf32>,
    return
  }
  func.func @transform_0(%arg0: i32, %arg1: i32) -> (i32, i32, i32) {
    %c0_i32 = arith.constant 0 : i32
    %c0_i32_0 = arith.constant 0 : i32
    return %arg0, %arg1, %c0_i32 : i32, i32, i32
  }
  func.func @transform_1(%arg0: i32, %arg1: i32) -> (i32, i32) {
    %c0_i32 = arith.constant 0 : i32
    %c0_i32_0 = arith.constant 0 : i32
    %c0_i32_1 = arith.constant 0 : i32
    return %c0_i32, %c0_i32_0 : i32, i32
  }
  func.func @transform_2(%arg0: i32, %arg1: i32) -> (i32, i32, i32) {
    %c0_i32 = arith.constant 0 : i32
    %c0_i32_0 = arith.constant 0 : i32
    return %arg0, %arg1, %c0_i32 : i32, i32, i32
  }
  func.func @transform_3(%arg0: i32, %arg1: i32) -> (i32, i32, i32) {
    %c0_i32 = arith.constant 0 : i32
    %c0_i32_0 = arith.constant 0 : i32
    return %arg0, %arg1, %c0_i32 : i32, i32, i32
  }
  func.func @transform_4(%arg0: i32, %arg1: i32) -> (i32, i32, i32) {
    %c0_i32 = arith.constant 0 : i32
    %c0_i32_0 = arith.constant 0 : i32
    return %arg0, %arg1, %c0_i32 : i32, i32, i32
  }
}

module attributes {stable_mosaic.version = 11 : i64} {
  func.func @bn_relu_nchw_kernel(%arg0: i32, %arg1: i32, %arg2: memref<1x256x128xbf16, #tpu.memory_space<vmem>>, %arg3: memref<1x128xf32, #tpu.memory_space<vmem>>, %arg4: memref<1x128xf32, #tpu.memory_space<vmem>>, %arg5: memref<1x8x256xf32, #tpu.memory_space<vmem>>) attributes {dimension_semantics = [#tpu.dimension_semantics<parallel>, #tpu.dimension_semantics<parallel>], iteration_bounds = array<i64: 2, 1>, scalar_prefetch = 0 : i64, scratch_operands = 0 : i64, tpu.core_type = #tpu.core_type<tc>, window_params = [{transform_indices = @transform_0, window_bounds = array<i64: 1, 256, 128>}, {pipeline_mode = #tpu.pipeline_mode<synchronous>, transform_indices = @transform_1, window_bounds = array<i64: 1, 128>}, {pipeline_mode = #tpu.pipeline_mode<synchronous>, transform_indices = @transform_2, window_bounds = array<i64: 1, 128>}, {transform_indices = @transform_3, window_bounds = array<i64: 1, 8, 256>}]} {
    %c0 = arith.constant 0 : index
    %c0_0 = arith.constant 0 : index
    %c0_1 = arith.constant 0 : index
    %0 = vector.load %arg2[%c0, %c0_0, %c0_1] : memref<1x256x128xbf16, #tpu.memory_space<vmem>>, vector<1x256x128xbf16>
    %1 = vector.shape_cast %0 : vector<1x256x128xbf16> to vector<256x128xbf16>
    %2 = arith.extf %1 : vector<256x128xbf16> to vector<256x128xf32>
    %c0_2 = arith.constant 0 : index
    %c0_3 = arith.constant 0 : index
    %3 = vector.load %arg3[%c0_2, %c0_3] : memref<1x128xf32, #tpu.memory_space<vmem>>, vector<1x128xf32>
    %4 = vector.broadcast %3 : vector<1x128xf32> to vector<256x128xf32>
    %5 = arith.mulf %2, %4 : vector<256x128xf32>
    %c0_4 = arith.constant 0 : index
    %c0_5 = arith.constant 0 : index
    %6 = vector.load %arg4[%c0_4, %c0_5] : memref<1x128xf32, #tpu.memory_space<vmem>>, vector<1x128xf32>
    %7 = vector.broadcast %6 : vector<1x128xf32> to vector<256x128xf32>
    %8 = arith.addf %5, %7 : vector<256x128xf32>
    %cst = arith.constant 0.000000e+00 : f32
    %9 = vector.broadcast %cst : f32 to vector<256x128xf32>
    %10 = arith.maximumf %8, %9 : vector<256x128xf32>
    %11 = tpu.transpose %10, [1, 0] : vector<256x128xf32> -> vector<128x256xf32>
    %12 = vector.extract_strided_slice %11 {offsets = [0, 0], sizes = [8, 256], strides = [1, 1]} : vector<128x256xf32> to vector<8x256xf32>
    %c0_6 = arith.constant 0 : index
    %c0_7 = arith.constant 0 : index
    %c0_8 = arith.constant 0 : index
    %13 = vector.load %arg5[%c0_6, %c0_7, %c0_8] : memref<1x8x256xf32, #tpu.memory_space<vmem>>, vector<1x8x256xf32>
    %14 = vector.shape_cast %13 : vector<1x8x256xf32> to vector<8x256xf32>
    %15 = vector.shape_cast %12 : vector<8x256xf32> to vector<1x8x256xf32>
    tpu.vector_store %arg5[%c0_6, %c0_7, %c0_8], %15 {strides = array<i32>} : memref<1x8x256xf32, #tpu.memory_space<vmem>>, vector<1x8x256xf32>,
    return
  }
  func.func @transform_0(%arg0: i32, %arg1: i32) -> (i32, i32, i32) {
    %c0_i32 = arith.constant 0 : i32
    %c0_i32_0 = arith.constant 0 : i32
    return %arg0, %arg1, %c0_i32 : i32, i32, i32
  }
  func.func @transform_1(%arg0: i32, %arg1: i32) -> (i32, i32) {
    %c0_i32 = arith.constant 0 : i32
    %c0_i32_0 = arith.constant 0 : i32
    %c0_i32_1 = arith.constant 0 : i32
    return %c0_i32, %c0_i32_0 : i32, i32
  }
  func.func @transform_2(%arg0: i32, %arg1: i32) -> (i32, i32) {
    %c0_i32 = arith.constant 0 : i32
    %c0_i32_0 = arith.constant 0 : i32
    %c0_i32_1 = arith.constant 0 : i32
    return %c0_i32, %c0_i32_0 : i32, i32
  }
  func.func @transform_3(%arg0: i32, %arg1: i32) -> (i32, i32, i32) {
    %c0_i32 = arith.constant 0 : i32
    %c0_i32_0 = arith.constant 0 : i32
    return %arg0, %c0_i32, %arg1 : i32, i32, i32
  }
}

</mosaic_0001>

<llo_original>
// kernel: conv_bn_relu.3
$region0: #{conv_bn_relu.3}
  #allocation0 [shape = 'u32[]', space=smem, size = 0x4, offset = 0x4, fixed_abs, tag = 'smem constant byte address 0x4 - core index']
  #allocation1 [shape = 'u32[144,128]{1,0:T(1,128)}', space=vmem, size = 0x12000, scoped, tag = 'internal scratch']
  %s0 = inlined_call_operand.vmem [shape: bf16[2,256,128], index: 0, kind: input, shape index: {}]
  %s1 = inlined_call_operand.vmem [shape: f32[1,128], index: 1, kind: input, shape index: {}]
  %s2 = inlined_call_operand.vmem [shape: f32[1,128], index: 2, kind: input, shape index: {}]
  %s3 = inlined_call_operand.vmem [shape: f32[2,8,256], index: 3, kind: output, shape index: {}]
  %s4 = sld [smem:[#allocation0]]
  $region45: #{conv_bn_relu.3} parent=0
    _
  %s6 = ssub.s32 1, %s4
  %s7 = scalar_select 0, %s6, %s4
  loop: start=0, step=1, limit=4
  $region2: #{conv_bn_relu.3} parent=0 // loop_pre_header
    _
  $region3: #{conv_bn_relu.3} parent=0 // loop_header
    %s9 = sphi 0, %s13
    %p10 = scmp.ge.s32.totalorder %s9, 4
    %s16 = sphi 0, %s28
    %s17 = sphi 0, %s24
    %s18 = sphi 0, %s16
    %s19 = sphi 0, %s17
    %s20 = sphi 0, %s18
    %s21 = sphi 0, %s19
    %s33 = sphi 0, %s35
    %s36 = sphi 0, %s33
    %s37 = sphi 0, %s36
    %s53 = sphi 0, %s37
    %s57 = sphi 0, %s57
    %s59 = sphi 0, %s57
    %s60 = sphi 0, %s59
    %s74 = sphi 0, %s60
    %s78 = sphi 0, %s78
    %s80 = sphi 0, %s78
    %s81 = sphi 0, %s80
    %s95 = sphi 0, %s81
    %s103 = sphi 0, %s105
    %s106 = sphi 0, %s103
    %s107 = sphi 0, %s106
    %s123 = sphi 0, %s107
  $region4: #{conv_bn_relu.3} parent=0 // loop_header_branch
    %12 = sbr.rel (%p10) target = $region8
  $region5: #{conv_bn_relu.3} parent=0 // loop_body
    %s14 = ssub.s32 %s9, 1
    %s15 = ssub.s32 %s9, 2
    %s22 = sadd.s32 1, %s17
    %p23 = scmp.ge.s32.totalorder %s22, 1
    %s24 = scalar_select %p23, 0, %s22
    %s25 = sadd.s32 1, %s16
    %s26 = scalar_select %p23, %s25, %s16
    %p27 = scmp.ge.s32.totalorder %s26, 2
    %s28 = scalar_select %p27, 0, %s26
    %s29 = ssub.s32 %s16, %s28
    %s30 = ssub.s32 %s17, %s24
    %s31 = sor.u32 %s29, %s30
    %p32 = scmp.eq.s32.totalorder %s31, 0
    %s34 = sadd.s32 %s33, 1
    %s35 = scalar_select %p32, %s33, %s34
    %p38 = pneg %p32
    %p39 = scmp.eq.s32.totalorder %s9, 1
    %p40 = por %p38, %p39
    %p41 = scmp.ne.s32.totalorder %s33, %s36
    %p42 = scmp.eq.s32.totalorder %s9, 0
    %p43 = por %p41, %p42
    %p44 = scmp.ne.s32.totalorder %s33, %s36
    %p45 = scmp.eq.s32.totalorder %s14, 1
    %p46 = por %p44, %p45
    %p47 = scmp.ne.s32.totalorder %s36, %s37
    %p48 = scmp.eq.s32.totalorder %s14, 0
    %p49 = por %p47, %p48
    %p50 = scmp.ne.s32.totalorder %s36, %s37
    %p51 = scmp.eq.s32.totalorder %s15, 1
    %p52 = por %p50, %p51
    %p54 = scmp.ne.s32.totalorder %s37, %s53
    %p55 = scmp.eq.s32.totalorder %s15, 0
    %p56 = por %p54, %p55
    %s58 = sadd.s32 %s57, 1
    %p61 = scmp.eq.s32.totalorder %s9, 1
    %p62 = scmp.ne.s32.totalorder %s57, %s59
    %p63 = scmp.eq.s32.totalorder %s9, 0
    %p64 = por %p62, %p63
    %p65 = scmp.ne.s32.totalorder %s57, %s59
    %p66 = scmp.eq.s32.totalorder %s14, 1
    %p67 = por %p65, %p66
    %p68 = scmp.ne.s32.totalorder %s59, %s60
    %p69 = scmp.eq.s32.totalorder %s14, 0
    %p70 = por %p68, %p69
    %p71 = scmp.ne.s32.totalorder %s59, %s60
    %p72 = scmp.eq.s32.totalorder %s15, 1
    %p73 = por %p71, %p72
    %p75 = scmp.ne.s32.totalorder %s60, %s74
    %p76 = scmp.eq.s32.totalorder %s15, 0
    %p77 = por %p75, %p76
    %s79 = sadd.s32 %s78, 1
    %p82 = scmp.eq.s32.totalorder %s9, 1
    %p83 = scmp.ne.s32.totalorder %s78, %s80
    %p84 = scmp.eq.s32.totalorder %s9, 0
    %p85 = por %p83, %p84
    %p86 = scmp.ne.s32.totalorder %s78, %s80
    %p87 = scmp.eq.s32.totalorder %s14, 1
    %p88 = por %p86, %p87
    %p89 = scmp.ne.s32.totalorder %s80, %s81
    %p90 = scmp.eq.s32.totalorder %s14, 0
    %p91 = por %p89, %p90
    %p92 = scmp.ne.s32.totalorder %s80, %s81
    %p93 = scmp.eq.s32.totalorder %s15, 1
    %p94 = por %p92, %p93
    %p96 = scmp.ne.s32.totalorder %s81, %s95
    %p97 = scmp.eq.s32.totalorder %s15, 0
    %p98 = por %p96, %p97
    %s99 = ssub.s32 %s16, %s28
    %s100 = ssub.s32 %s17, %s24
    %s101 = sor.u32 %s99, %s100
    %p102 = scmp.eq.s32.totalorder %s101, 0
    %s104 = sadd.s32 %s103, 1
    %s105 = scalar_select %p102, %s103, %s104
    %p108 = pneg %p102
    %p109 = scmp.eq.s32.totalorder %s9, 1
    %p110 = por %p108, %p109
    %p111 = scmp.ne.s32.totalorder %s103, %s106
    %p112 = scmp.eq.s32.totalorder %s9, 0
    %p113 = por %p111, %p112
    %p114 = scmp.ne.s32.totalorder %s103, %s106
    %p115 = scmp.eq.s32.totalorder %s14, 1
    %p116 = por %p114, %p115
    %p117 = scmp.ne.s32.totalorder %s106, %s107
    %p118 = scmp.eq.s32.totalorder %s14, 0
    %p119 = por %p117, %p118
    %p120 = scmp.ne.s32.totalorder %s106, %s107
    %p121 = scmp.eq.s32.totalorder %s15, 1
    %p122 = por %p120, %p121
    %p124 = scmp.ne.s32.totalorder %s107, %s123
    %p125 = scmp.eq.s32.totalorder %s15, 0
    %p126 = por %p124, %p125
    %p127 = scmp.le.s32.totalorder 1, %s9
    %p128 = scmp.lt.s32.totalorder %s9, 3
    %p129 = pnand %p127, %p128
    %p130 = pneg %p129
    // Predicated region
    $region9: #{conv_bn_relu.3} parent=5 // pred_check
      _
    $region10: #{conv_bn_relu.3} parent=5 // pred_check_branch
      %132 = sbr.rel (%p129) target = $region12
    $region11: #{conv_bn_relu.3} parent=5 // pred_region
      %s133 = ssub.s32 %s9, 1
      // Predicated region
      $region13: #{conv_bn_relu.3} parent=11 // pred_check
        %p134 = pneg %p70
      $region14: #{conv_bn_relu.3} parent=11 // pred_check_branch
        %136 = sbr.rel (%p134) target = $region16
      $region15: #{conv_bn_relu.3} parent=11 // pred_region
        _
      $region16: #{conv_bn_relu.3} parent=11 // pred_fallthru
        _
      // Predicated region
      $region17: #{conv_bn_relu.3} parent=11 // pred_check
        %p137 = pneg %p91
      $region18: #{conv_bn_relu.3} parent=11 // pred_check_branch
        %139 = sbr.rel (%p137) target = $region20
      $region19: #{conv_bn_relu.3} parent=11 // pred_region
        _
      $region20: #{conv_bn_relu.3} parent=11 // pred_fallthru
        _
    $region12: #{conv_bn_relu.3} parent=5 // pred_fallthru
      _
    %p140 = scmp.lt.s32.totalorder %s9, 2
    // Predicated region
    $region21: #{conv_bn_relu.3} parent=5 // pred_check
      %p141 = pneg %p140
    $region22: #{conv_bn_relu.3} parent=5 // pred_check_branch
      %143 = sbr.rel (%p141) target = $region24
    $region23: #{conv_bn_relu.3} parent=5 // pred_region
      // Predicated region
      $region25: #{conv_bn_relu.3} parent=23 // pred_check
        %p144 = pneg %p43
      $region26: #{conv_bn_relu.3} parent=23 // pred_check_branch
        %146 = sbr.rel (%p144) target = $region28
      $region27: #{conv_bn_relu.3} parent=23 // pred_region
        %s147 = smul.u32 32, %s17
        %p148 = scmp.lt.s32.totalorder %s16, 1
        %s149 = scalar_select %p148, %s16, 1
        %p150 = scmp.lt.s32.totalorder %s147, 31
        %s151 = scalar_select %p150, %s147, 31
        %s152 = smul.addr %s149, 32
        %s153 = sadd.s32 %s151, %s152
        %s154 = smul.addr %s153, 4
        %s155 = scalar_lea.vmem %s0, %s154
        %s156 = smul.u32 32, %s17
      $region28: #{conv_bn_relu.3} parent=23 // pred_fallthru
        _
    $region24: #{conv_bn_relu.3} parent=5 // pred_fallthru
      _
    %p157 = scmp.le.s32.totalorder 1, %s9
    %p158 = scmp.lt.s32.totalorder %s9, 3
    %p159 = pnand %p157, %p158
    %p160 = pneg %p159
    // Predicated region
    $region29: #{conv_bn_relu.3} parent=5 // pred_check
      _
    $region30: #{conv_bn_relu.3} parent=5 // pred_check_branch
      %162 = sbr.rel (%p159) target = $region32
    $region31: #{conv_bn_relu.3} parent=5 // pred_region
      %s163 = ssub.s32 %s9, 1
      %s164 = smul.u32 32, %s19
      %p165 = scmp.lt.s32.totalorder %s18, 1
      %s166 = scalar_select %p165, %s18, 1
      %p167 = scmp.lt.s32.totalorder %s164, 31
      %s168 = scalar_select %p167, %s164, 31
      %s169 = smul.addr %s166, 32
      %s170 = sadd.s32 %s168, %s169
      %s171 = smul.addr %s170, 4
      %s172 = scalar_lea.vmem %s0, %s171
      %p173 = pneg %p49
      %p174 = pneg %p46
      %p175 = pneg %p70
      %p176 = pneg %p67
      %p177 = pneg %p91
      %p178 = pneg %p88
      %p179 = pneg %p119
      %p180 = pneg %p116
      %s181 = smul.u32 2, %s19
      %p182 = scmp.lt.s32.totalorder %s18, 1
      %s183 = scalar_select %p182, %s18, 1
      %p184 = scmp.lt.s32.totalorder %s181, 1
      %s185 = scalar_select %p184, %s181, 1
      %s186 = smul.addr %s183, 2
      %s187 = sadd.s32 %s185, %s186
      %s188 = smul.addr %s187, 8
      %s189 = scalar_lea.vmem %s3, %s188
      %s190 = smul.u32 32, %s19
      %p191 = scmp.lt.s32.totalorder %s18, 1
      %s192 = scalar_select %p191, %s18, 1
      %p193 = scmp.lt.s32.totalorder %s190, 31
      %s194 = scalar_select %p193, %s190, 31
      %s195 = smul.addr %s192, 32
      %s196 = sadd.s32 %s194, %s195
      %s197 = smul.addr %s196, 4
      %s198 = scalar_lea.vmem %s0, %s197
      %s199 = smul.u32 32, %s19
      %s200 = smul.u32 2, %s19
      %p201 = scmp.lt.s32.totalorder %s18, 1
      %s202 = scalar_select %p201, %s18, 1
      %p203 = scmp.lt.s32.totalorder %s200, 1
      %s204 = scalar_select %p203, %s200, 1
      %s205 = smul.addr %s202, 2
      %s206 = sadd.s32 %s204, %s205
      %s207 = smul.addr %s206, 8
      %s208 = scalar_lea.vmem %s3, %s207
      %s209 = smul.u32 2, %s19
      %v210 = vld [vmem:[%s198] sm:$0xf]
      %v211 = vld [vmem:[%s198 + $0x4] sm:$0xf]
      %v212 = vld [vmem:[%s198 + $0x8] sm:$0xf]
      %v213 = vld [vmem:[%s198 + $0xc] sm:$0xf]
      %v214 = vld [vmem:[%s198 + $0x10] sm:$0xf]
      %v215 = vld [vmem:[%s198 + $0x14] sm:$0xf]
      %v216 = vld [vmem:[%s198 + $0x18] sm:$0xf]
      %v217 = vld [vmem:[%s198 + $0x1c] sm:$0xf]
      %v218 = vld [vmem:[%s198 + $0x20] sm:$0xf]
      %v219 = vld [vmem:[%s198 + $0x24] sm:$0xf]
      %v220 = vld [vmem:[%s198 + $0x28] sm:$0xf]
      %v221 = vld [vmem:[%s198 + $0x2c] sm:$0xf]
      %v222 = vld [vmem:[%s198 + $0x30] sm:$0xf]
      %v223 = vld [vmem:[%s198 + $0x34] sm:$0xf]
      %v224 = vld [vmem:[%s198 + $0x38] sm:$0xf]
      %v225 = vld [vmem:[%s198 + $0x3c] sm:$0xf]
      %v226 = vld [vmem:[%s198 + $0x40] sm:$0xf]
      %v227 = vld [vmem:[%s198 + $0x44] sm:$0xf]
      %v228 = vld [vmem:[%s198 + $0x48] sm:$0xf]
      %v229 = vld [vmem:[%s198 + $0x4c] sm:$0xf]
      %v230 = vld [vmem:[%s198 + $0x50] sm:$0xf]
      %v231 = vld [vmem:[%s198 + $0x54] sm:$0xf]
      %v232 = vld [vmem:[%s198 + $0x58] sm:$0xf]
      %v233 = vld [vmem:[%s198 + $0x5c] sm:$0xf]
      %v234 = vld [vmem:[%s198 + $0x60] sm:$0xf]
      %v235 = vld [vmem:[%s198 + $0x64] sm:$0xf]
      %v236 = vld [vmem:[%s198 + $0x68] sm:$0xf]
      %v237 = vld [vmem:[%s198 + $0x6c] sm:$0xf]
      %v238 = vld [vmem:[%s198 + $0x70] sm:$0xf]
      %v239 = vld [vmem:[%s198 + $0x74] sm:$0xf]
      %v240 = vld [vmem:[%s198 + $0x78] sm:$0xf]
      %v241 = vld [vmem:[%s198 + $0x7c] sm:$0xf]
      %v242 = vunpack.c.l.bf16 %v210
      %v243 = vunpack.c.l.bf16 %v211
      %v244 = vunpack.c.l.bf16 %v212
      %v245 = vunpack.c.l.bf16 %v213
      %v246 = vunpack.c.l.bf16 %v214
      %v247 = vunpack.c.l.bf16 %v215
      %v248 = vunpack.c.l.bf16 %v216
      %v249 = vunpack.c.l.bf16 %v217
      %v250 = vunpack.c.l.bf16 %v218
      %v251 = vunpack.c.l.bf16 %v219
      %v252 = vunpack.c.l.bf16 %v220
      %v253 = vunpack.c.l.bf16 %v221
      %v254 = vunpack.c.l.bf16 %v222
      %v255 = vunpack.c.l.bf16 %v223
      %v256 = vunpack.c.l.bf16 %v224
      %v257 = vunpack.c.l.bf16 %v225
      %v258 = vunpack.c.l.bf16 %v226
      %v259 = vunpack.c.l.bf16 %v227
      %v260 = vunpack.c.l.bf16 %v228
      %v261 = vunpack.c.l.bf16 %v229
      %v262 = vunpack.c.l.bf16 %v230
      %v263 = vunpack.c.l.bf16 %v231
      %v264 = vunpack.c.l.bf16 %v232
      %v265 = vunpack.c.l.bf16 %v233
      %v266 = vunpack.c.l.bf16 %v234
      %v267 = vunpack.c.l.bf16 %v235
      %v268 = vunpack.c.l.bf16 %v236
      %v269 = vunpack.c.l.bf16 %v237
      %v270 = vunpack.c.l.bf16 %v238
      %v271 = vunpack.c.l.bf16 %v239
      %v272 = vunpack.c.l.bf16 %v240
      %v273 = vunpack.c.l.bf16 %v241
      %v274 = vld [vmem:[%s1] sm:$0x1]
      %v276 = vlaneseq
      %v277 = vshrl.u32 %v276, 7
      %v278 = vsub.s32 0, %v277
      %v279 = vrot.slane %v274, %v278
      %v281 = vmul.f32 %v242, %v279
      %v282 = vmul.f32 %v243, %v279
      %v283 = vmul.f32 %v244, %v279
      %v284 = vmul.f32 %v245, %v279
      %v285 = vmul.f32 %v246, %v279
      %v286 = vmul.f32 %v247, %v279
      %v287 = vmul.f32 %v248, %v279
      %v288 = vmul.f32 %v249, %v279
      %v289 = vmul.f32 %v250, %v279
      %v290 = vmul.f32 %v251, %v279
      %v291 = vmul.f32 %v252, %v279
      %v292 = vmul.f32 %v253, %v279
      %v293 = vmul.f32 %v254, %v279
      %v294 = vmul.f32 %v255, %v279
      %v295 = vmul.f32 %v256, %v279
      %v296 = vmul.f32 %v257, %v279
      %v297 = vmul.f32 %v258, %v279
      %v298 = vmul.f32 %v259, %v279
      %v299 = vmul.f32 %v260, %v279
      %v300 = vmul.f32 %v261, %v279
      %v301 = vmul.f32 %v262, %v279
      %v302 = vmul.f32 %v263, %v279
      %v303 = vmul.f32 %v264, %v279
      %v304 = vmul.f32 %v265, %v279
      %v305 = vmul.f32 %v266, %v279
      %v306 = vmul.f32 %v267, %v279
      %v307 = vmul.f32 %v268, %v279
      %v308 = vmul.f32 %v269, %v279
      %v309 = vmul.f32 %v270, %v279
      %v310 = vmul.f32 %v271, %v279
      %v311 = vmul.f32 %v272, %v279
      %v312 = vmul.f32 %v273, %v279
      %v313 = vld [vmem:[%s2] sm:$0x1]
      %v315 = vlaneseq
      %v316 = vshrl.u32 %v315, 7
      %v317 = vsub.s32 0, %v316
      %v318 = vrot.slane %v313, %v317
      %v320 = vadd.f32 %v281, %v318
      %v321 = vadd.f32 %v282, %v318
      %v322 = vadd.f32 %v283, %v318
      %v323 = vadd.f32 %v284, %v318
      %v324 = vadd.f32 %v285, %v318
      %v325 = vadd.f32 %v286, %v318
      %v326 = vadd.f32 %v287, %v318
      %v327 = vadd.f32 %v288, %v318
      %v328 = vadd.f32 %v289, %v318
      %v329 = vadd.f32 %v290, %v318
      %v330 = vadd.f32 %v291, %v318
      %v331 = vadd.f32 %v292, %v318
      %v332 = vadd.f32 %v293, %v318
      %v333 = vadd.f32 %v294, %v318
      %v334 = vadd.f32 %v295, %v318
      %v335 = vadd.f32 %v296, %v318
      %v336 = vadd.f32 %v297, %v318
      %v337 = vadd.f32 %v298, %v318
      %v338 = vadd.f32 %v299, %v318
      %v339 = vadd.f32 %v300, %v318
      %v340 = vadd.f32 %v301, %v318
      %v341 = vadd.f32 %v302, %v318
      %v342 = vadd.f32 %v303, %v318
      %v343 = vadd.f32 %v304, %v318
      %v344 = vadd.f32 %v305, %v318
      %v345 = vadd.f32 %v306, %v318
      %v346 = vadd.f32 %v307, %v318
      %v347 = vadd.f32 %v308, %v318
      %v348 = vadd.f32 %v309, %v318
      %v349 = vadd.f32 %v310, %v318
      %v350 = vadd.f32 %v311, %v318
      %v351 = vadd.f32 %v312, %v318
      %v352 = vmax.f32 %v320, 0.0
      %v353 = vmax.f32 %v321, 0.0
      %v354 = vmax.f32 %v322, 0.0
      %v355 = vmax.f32 %v323, 0.0
      %v356 = vmax.f32 %v324, 0.0
      %v357 = vmax.f32 %v325, 0.0
      %v358 = vmax.f32 %v326, 0.0
      %v359 = vmax.f32 %v327, 0.0
      %v360 = vmax.f32 %v328, 0.0
      %v361 = vmax.f32 %v329, 0.0
      %v362 = vmax.f32 %v330, 0.0
      %v363 = vmax.f32 %v331, 0.0
      %v364 = vmax.f32 %v332, 0.0
      %v365 = vmax.f32 %v333, 0.0
      %v366 = vmax.f32 %v334, 0.0
      %v367 = vmax.f32 %v335, 0.0
      %v368 = vmax.f32 %v336, 0.0
      %v369 = vmax.f32 %v337, 0.0
      %v370 = vmax.f32 %v338, 0.0
      %v371 = vmax.f32 %v339, 0.0
      %v372 = vmax.f32 %v340, 0.0
      %v373 = vmax.f32 %v341, 0.0
      %v374 = vmax.f32 %v342, 0.0
      %v375 = vmax.f32 %v343, 0.0
      %v376 = vmax.f32 %v344, 0.0
      %v377 = vmax.f32 %v345, 0.0
      %v378 = vmax.f32 %v346, 0.0
      %v379 = vmax.f32 %v347, 0.0
      %v380 = vmax.f32 %v348, 0.0
      %v381 = vmax.f32 %v349, 0.0
      %v382 = vmax.f32 %v350, 0.0
      %v383 = vmax.f32 %v351, 0.0
      %384 = vxpose.xlu0.b32.start [1/16] %v352, 128
      %385 = vxpose.xlu0.b32.cont [2/16] %v353, 128
      %386 = vxpose.xlu0.b32.cont [3/16] %v354, 128
      %387 = vxpose.xlu0.b32.cont [4/16] %v355, 128
      %388 = vxpose.xlu0.b32.cont [5/16] %v356, 128
      %389 = vxpose.xlu0.b32.cont [6/16] %v357, 128
      %390 = vxpose.xlu0.b32.cont [7/16] %v358, 128
      %391 = vxpose.xlu0.b32.cont [8/16] %v359, 128
      %392 = vxpose.xlu0.b32.cont [9/16] %v360, 128
      %393 = vxpose.xlu0.b32.cont [10/16] %v361, 128
      %394 = vxpose.xlu0.b32.cont [11/16] %v362, 128
      %395 = vxpose.xlu0.b32.cont [12/16] %v363, 128
      %396 = vxpose.xlu0.b32.cont [13/16] %v364, 128
      %397 = vxpose.xlu0.b32.cont [14/16] %v365, 128
      %398 = vxpose.xlu0.b32.cont [15/16] %v366, 128
      %399 = vxpose.xlu0.b32.end [16/16] %v367, 128
      %v400 = vpop.trf.xlu0
      %v401 = vpop.trf.xlu0
      %v402 = vpop.trf.xlu0
      %v403 = vpop.trf.xlu0
      %v404 = vpop.trf.xlu0
      %v405 = vpop.trf.xlu0
      %v406 = vpop.trf.xlu0
      %v407 = vpop.trf.xlu0
      %v408 = vpop.trf.xlu0
      %v409 = vpop.trf.xlu0
      %v410 = vpop.trf.xlu0
      %v411 = vpop.trf.xlu0
      %v412 = vpop.trf.xlu0
      %v413 = vpop.trf.xlu0
      %v414 = vpop.trf.xlu0
      %v415 = vpop.trf.xlu0
      %416 = vxpose.xlu0.b32.start [1/16] %v368, 128
      %417 = vxpose.xlu0.b32.cont [2/16] %v369, 128
      %418 = vxpose.xlu0.b32.cont [3/16] %v370, 128
      %419 = vxpose.xlu0.b32.cont [4/16] %v371, 128
      %420 = vxpose.xlu0.b32.cont [5/16] %v372, 128
      %421 = vxpose.xlu0.b32.cont [6/16] %v373, 128
      %422 = vxpose.xlu0.b32.cont [7/16] %v374, 128
      %423 = vxpose.xlu0.b32.cont [8/16] %v375, 128
      %424 = vxpose.xlu0.b32.cont [9/16] %v376, 128
      %425 = vxpose.xlu0.b32.cont [10/16] %v377, 128
      %426 = vxpose.xlu0.b32.cont [11/16] %v378, 128
      %427 = vxpose.xlu0.b32.cont [12/16] %v379, 128
      %428 = vxpose.xlu0.b32.cont [13/16] %v380, 128
      %429 = vxpose.xlu0.b32.cont [14/16] %v381, 128
      %430 = vxpose.xlu0.b32.cont [15/16] %v382, 128
      %431 = vxpose.xlu0.b32.end [16/16] %v383, 128
      %v432 = vpop.trf.xlu0
      %v433 = vpop.trf.xlu0
      %v434 = vpop.trf.xlu0
      %v435 = vpop.trf.xlu0
      %v436 = vpop.trf.xlu0
      %v437 = vpop.trf.xlu0
      %v438 = vpop.trf.xlu0
      %v439 = vpop.trf.xlu0
      %v440 = vpop.trf.xlu0
      %v441 = vpop.trf.xlu0
      %v442 = vpop.trf.xlu0
      %v443 = vpop.trf.xlu0
      %v444 = vpop.trf.xlu0
      %v445 = vpop.trf.xlu0
      %v446 = vpop.trf.xlu0
      %v447 = vpop.trf.xlu0
      %448 = vst [vmem:[%s208] sm:$0xff] %v400
      %449 = vst [vmem:[%s208 + $0x8] sm:$0xff] %v432
      %s450 = smul.u32 2, %s19
      %p451 = scmp.lt.s32.totalorder %s18, 1
      %s452 = scalar_select %p451, %s18, 1
      %p453 = scmp.lt.s32.totalorder %s450, 1
      %s454 = scalar_select %p453, %s450, 1
      %s455 = smul.addr %s452, 2
      %s456 = sadd.s32 %s454, %s455
      %s457 = smul.addr %s456, 8
      %s458 = scalar_lea.vmem %s3, %s457
      // Predicated region
      $region33: #{conv_bn_relu.3} parent=31 // pred_check
        %p459 = pneg %p116
      $region34: #{conv_bn_relu.3} parent=31 // pred_check_branch
        %461 = sbr.rel (%p459) target = $region36
      $region35: #{conv_bn_relu.3} parent=31 // pred_region
        %s462 = smul.u32 2, %s19
      $region36: #{conv_bn_relu.3} parent=31 // pred_fallthru
        _
    $region32: #{conv_bn_relu.3} parent=5 // pred_fallthru
      _
    %p463 = scmp.le.s32.totalorder 2, %s9
    // Predicated region
    $region37: #{conv_bn_relu.3} parent=5 // pred_check
      %p464 = pneg %p463
    $region38: #{conv_bn_relu.3} parent=5 // pred_check_branch
      %466 = sbr.rel (%p464) target = $region40
    $region39: #{conv_bn_relu.3} parent=5 // pred_region
      %s467 = ssub.s32 %s9, 2
      // Predicated region
      $region41: #{conv_bn_relu.3} parent=39 // pred_check
        %p468 = pneg %p122
      $region42: #{conv_bn_relu.3} parent=39 // pred_check_branch
        %470 = sbr.rel (%p468) target = $region44
      $region43: #{conv_bn_relu.3} parent=39 // pred_region
        %s471 = smul.u32 2, %s21
        %p472 = scmp.lt.s32.totalorder %s20, 1
        %s473 = scalar_select %p472, %s20, 1
        %p474 = scmp.lt.s32.totalorder %s471, 1
        %s475 = scalar_select %p474, %s471, 1
        %s476 = smul.addr %s473, 2
        %s477 = sadd.s32 %s475, %s476
        %s478 = smul.addr %s477, 8
        %s479 = scalar_lea.vmem %s3, %s478
      $region44: #{conv_bn_relu.3} parent=39 // pred_fallthru
        _
    $region40: #{conv_bn_relu.3} parent=5 // pred_fallthru
      _
  $region6: #{conv_bn_relu.3} parent=0 // loop_footer
    %s13 = sadd.s32 1, %s9
  $region7: #{conv_bn_relu.3} parent=0 // loop_footer_branch
    %8 = sbr.rel target = $region3
  $region8: #{conv_bn_relu.3} parent=0 // loop_exit
    _

// kernel: conv_bn_relu.2
$region0: #{conv_bn_relu.2}
  #allocation0 [shape = 'u32[]', space=smem, size = 0x4, offset = 0x4, fixed_abs, tag = 'smem constant byte address 0x4 - core index']
  #allocation1 [shape = 'u32[144,128]{1,0:T(1,128)}', space=vmem, size = 0x12000, scoped, tag = 'internal scratch']
  %s0 = inlined_call_operand.vmem [shape: bf16[2,256,128], index: 0, kind: input, shape index: {}]
  %s1 = inlined_call_operand.vmem [shape: bf16[128,128], index: 1, kind: input, shape index: {}]
  %s2 = inlined_call_operand.vmem [shape: bf16[2,256,128], index: 2, kind: output, shape index: {0}]
  %s3 = inlined_call_operand.vmem [shape: f32[2,8,128], index: 3, kind: output, shape index: {1}]
  %s4 = inlined_call_operand.vmem [shape: f32[2,8,128], index: 4, kind: output, shape index: {2}]
  %5 = xla_tuple %s2, %s3, %s4
  %s6 = sld [smem:[#allocation0]]
  $region57: #{conv_bn_relu.2} parent=0
    _
  %s8 = ssub.s32 1, %s6
  %s9 = scalar_select 0, %s8, %s6
  loop: start=0, step=1, limit=4
  $region2: #{conv_bn_relu.2} parent=0 // loop_pre_header
    _
  $region3: #{conv_bn_relu.2} parent=0 // loop_header
    %s11 = sphi 0, %s15
    %p12 = scmp.ge.s32.totalorder %s11, 4
    %s18 = sphi 0, %s30
    %s19 = sphi 0, %s26
    %s20 = sphi 0, %s18
    %s21 = sphi 0, %s19
    %s22 = sphi 0, %s20
    %s23 = sphi 0, %s21
    %s35 = sphi 0, %s37
    %s38 = sphi 0, %s35
    %s39 = sphi 0, %s38
    %s55 = sphi 0, %s39
    %s59 = sphi 0, %s59
    %s61 = sphi 0, %s59
    %s62 = sphi 0, %s61
    %s76 = sphi 0, %s62
    %s84 = sphi 0, %s86
    %s87 = sphi 0, %s84
    %s88 = sphi 0, %s87
    %s104 = sphi 0, %s88
    %s112 = sphi 0, %s114
    %s115 = sphi 0, %s112
    %s116 = sphi 0, %s115
    %s132 = sphi 0, %s116
    %s140 = sphi 0, %s142
    %s143 = sphi 0, %s140
    %s144 = sphi 0, %s143
    %s160 = sphi 0, %s144
  $region4: #{conv_bn_relu.2} parent=0 // loop_header_branch
    %14 = sbr.rel (%p12) target = $region8
  $region5: #{conv_bn_relu.2} parent=0 // loop_body
    %s16 = ssub.s32 %s11, 1
    %s17 = ssub.s32 %s11, 2
    %s24 = sadd.s32 1, %s19
    %p25 = scmp.ge.s32.totalorder %s24, 1
    %s26 = scalar_select %p25, 0, %s24
    %s27 = sadd.s32 1, %s18
    %s28 = scalar_select %p25, %s27, %s18
    %p29 = scmp.ge.s32.totalorder %s28, 2
    %s30 = scalar_select %p29, 0, %s28
    %s31 = ssub.s32 %s18, %s30
    %s32 = ssub.s32 %s19, %s26
    %s33 = sor.u32 %s31, %s32
    %p34 = scmp.eq.s32.totalorder %s33, 0
    %s36 = sadd.s32 %s35, 1
    %s37 = scalar_select %p34, %s35, %s36
    %p40 = pneg %p34
    %p41 = scmp.eq.s32.totalorder %s11, 1
    %p42 = por %p40, %p41
    %p43 = scmp.ne.s32.totalorder %s35, %s38
    %p44 = scmp.eq.s32.totalorder %s11, 0
    %p45 = por %p43, %p44
    %p46 = scmp.ne.s32.totalorder %s35, %s38
    %p47 = scmp.eq.s32.totalorder %s16, 1
    %p48 = por %p46, %p47
    %p49 = scmp.ne.s32.totalorder %s38, %s39
    %p50 = scmp.eq.s32.totalorder %s16, 0
    %p51 = por %p49, %p50
    %p52 = scmp.ne.s32.totalorder %s38, %s39
    %p53 = scmp.eq.s32.totalorder %s17, 1
    %p54 = por %p52, %p53
    %p56 = scmp.ne.s32.totalorder %s39, %s55
    %p57 = scmp.eq.s32.totalorder %s17, 0
    %p58 = por %p56, %p57
    %s60 = sadd.s32 %s59, 1
    %p63 = scmp.eq.s32.totalorder %s11, 1
    %p64 = scmp.ne.s32.totalorder %s59, %s61
    %p65 = scmp.eq.s32.totalorder %s11, 0
    %p66 = por %p64, %p65
    %p67 = scmp.ne.s32.totalorder %s59, %s61
    %p68 = scmp.eq.s32.totalorder %s16, 1
    %p69 = por %p67, %p68
    %p70 = scmp.ne.s32.totalorder %s61, %s62
    %p71 = scmp.eq.s32.totalorder %s16, 0
    %p72 = por %p70, %p71
    %p73 = scmp.ne.s32.totalorder %s61, %s62
    %p74 = scmp.eq.s32.totalorder %s17, 1
    %p75 = por %p73, %p74
    %p77 = scmp.ne.s32.totalorder %s62, %s76
    %p78 = scmp.eq.s32.totalorder %s17, 0
    %p79 = por %p77, %p78
    %s80 = ssub.s32 %s18, %s30
    %s81 = ssub.s32 %s19, %s26
    %s82 = sor.u32 %s80, %s81
    %p83 = scmp.eq.s32.totalorder %s82, 0
    %s85 = sadd.s32 %s84, 1
    %s86 = scalar_select %p83, %s84, %s85
    %p89 = pneg %p83
    %p90 = scmp.eq.s32.totalorder %s11, 1
    %p91 = por %p89, %p90
    %p92 = scmp.ne.s32.totalorder %s84, %s87
    %p93 = scmp.eq.s32.totalorder %s11, 0
    %p94 = por %p92, %p93
    %p95 = scmp.ne.s32.totalorder %s84, %s87
    %p96 = scmp.eq.s32.totalorder %s16, 1
    %p97 = por %p95, %p96
    %p98 = scmp.ne.s32.totalorder %s87, %s88
    %p99 = scmp.eq.s32.totalorder %s16, 0
    %p100 = por %p98, %p99
    %p101 = scmp.ne.s32.totalorder %s87, %s88
    %p102 = scmp.eq.s32.totalorder %s17, 1
    %p103 = por %p101, %p102
    %p105 = scmp.ne.s32.totalorder %s88, %s104
    %p106 = scmp.eq.s32.totalorder %s17, 0
    %p107 = por %p105, %p106
    %s108 = ssub.s32 %s18, %s30
    %s109 = ssub.s32 %s19, %s26
    %s110 = sor.u32 %s108, %s109
    %p111 = scmp.eq.s32.totalorder %s110, 0
    %s113 = sadd.s32 %s112, 1
    %s114 = scalar_select %p111, %s112, %s113
    %p117 = pneg %p111
    %p118 = scmp.eq.s32.totalorder %s11, 1
    %p119 = por %p117, %p118
    %p120 = scmp.ne.s32.totalorder %s112, %s115
    %p121 = scmp.eq.s32.totalorder %s11, 0
    %p122 = por %p120, %p121
    %p123 = scmp.ne.s32.totalorder %s112, %s115
    %p124 = scmp.eq.s32.totalorder %s16, 1
    %p125 = por %p123, %p124
    %p126 = scmp.ne.s32.totalorder %s115, %s116
    %p127 = scmp.eq.s32.totalorder %s16, 0
    %p128 = por %p126, %p127
    %p129 = scmp.ne.s32.totalorder %s115, %s116
    %p130 = scmp.eq.s32.totalorder %s17, 1
    %p131 = por %p129, %p130
    %p133 = scmp.ne.s32.totalorder %s116, %s132
    %p134 = scmp.eq.s32.totalorder %s17, 0
    %p135 = por %p133, %p134
    %s136 = ssub.s32 %s18, %s30
    %s137 = ssub.s32 %s19, %s26
    %s138 = sor.u32 %s136, %s137
    %p139 = scmp.eq.s32.totalorder %s138, 0
    %s141 = sadd.s32 %s140, 1
    %s142 = scalar_select %p139, %s140, %s141
    %p145 = pneg %p139
    %p146 = scmp.eq.s32.totalorder %s11, 1
    %p147 = por %p145, %p146
    %p148 = scmp.ne.s32.totalorder %s140, %s143
    %p149 = scmp.eq.s32.totalorder %s11, 0
    %p150 = por %p148, %p149
    %p151 = scmp.ne.s32.totalorder %s140, %s143
    %p152 = scmp.eq.s32.totalorder %s16, 1
    %p153 = por %p151, %p152
    %p154 = scmp.ne.s32.totalorder %s143, %s144
    %p155 = scmp.eq.s32.totalorder %s16, 0
    %p156 = por %p154, %p155
    %p157 = scmp.ne.s32.totalorder %s143, %s144
    %p158 = scmp.eq.s32.totalorder %s17, 1
    %p159 = por %p157, %p158
    %p161 = scmp.ne.s32.totalorder %s144, %s160
    %p162 = scmp.eq.s32.totalorder %s17, 0
    %p163 = por %p161, %p162
    %p164 = scmp.le.s32.totalorder 1, %s11
    %p165 = scmp.lt.s32.totalorder %s11, 3
    %p166 = pnand %p164, %p165
    %p167 = pneg %p166
    // Predicated region
    $region9: #{conv_bn_relu.2} parent=5 // pred_check
      _
    $region10: #{conv_bn_relu.2} parent=5 // pred_check_branch
      %169 = sbr.rel (%p166) target = $region12
    $region11: #{conv_bn_relu.2} parent=5 // pred_region
      %s170 = ssub.s32 %s11, 1
      // Predicated region
      $region13: #{conv_bn_relu.2} parent=11 // pred_check
        %p171 = pneg %p72
      $region14: #{conv_bn_relu.2} parent=11 // pred_check_branch
        %173 = sbr.rel (%p171) target = $region16
      $region15: #{conv_bn_relu.2} parent=11 // pred_region
        _
      $region16: #{conv_bn_relu.2} parent=11 // pred_fallthru
        _
    $region12: #{conv_bn_relu.2} parent=5 // pred_fallthru
      _
    %p174 = scmp.lt.s32.totalorder %s11, 2
    // Predicated region
    $region17: #{conv_bn_relu.2} parent=5 // pred_check
      %p175 = pneg %p174
    $region18: #{conv_bn_relu.2} parent=5 // pred_check_branch
      %177 = sbr.rel (%p175) target = $region20
    $region19: #{conv_bn_relu.2} parent=5 // pred_region
      // Predicated region
      $region21: #{conv_bn_relu.2} parent=19 // pred_check
        %p178 = pneg %p45
      $region22: #{conv_bn_relu.2} parent=19 // pred_check_branch
        %180 = sbr.rel (%p178) target = $region24
      $region23: #{conv_bn_relu.2} parent=19 // pred_region
        %s181 = smul.u32 32, %s19
        %p182 = scmp.lt.s32.totalorder %s18, 1
        %s183 = scalar_select %p182, %s18, 1
        %p184 = scmp.lt.s32.totalorder %s181, 31
        %s185 = scalar_select %p184, %s181, 31
        %s186 = smul.addr %s183, 32
        %s187 = sadd.s32 %s185, %s186
        %s188 = smul.addr %s187, 4
        %s189 = scalar_lea.vmem %s0, %s188
        %s190 = smul.u32 32, %s19
      $region24: #{conv_bn_relu.2} parent=19 // pred_fallthru
        _
    $region20: #{conv_bn_relu.2} parent=5 // pred_fallthru
      _
    %p191 = scmp.le.s32.totalorder 1, %s11
    %p192 = scmp.lt.s32.totalorder %s11, 3
    %p193 = pnand %p191, %p192
    %p194 = pneg %p193
    // Predicated region
    $region25: #{conv_bn_relu.2} parent=5 // pred_check
      _
    $region26: #{conv_bn_relu.2} parent=5 // pred_check_branch
      %196 = sbr.rel (%p193) target = $region28
    $region27: #{conv_bn_relu.2} parent=5 // pred_region
      %s197 = ssub.s32 %s11, 1
      %s198 = smul.u32 32, %s21
      %p199 = scmp.lt.s32.totalorder %s20, 1
      %s200 = scalar_select %p199, %s20, 1
      %p201 = scmp.lt.s32.totalorder %s198, 31
      %s202 = scalar_select %p201, %s198, 31
      %s203 = smul.addr %s200, 32
      %s204 = sadd.s32 %s202, %s203
      %s205 = smul.addr %s204, 4
      %s206 = scalar_lea.vmem %s0, %s205
      %p207 = pneg %p51
      %p208 = pneg %p48
      %p209 = pneg %p72
      %p210 = pneg %p69
      %p211 = pneg %p100
      %p212 = pneg %p97
      %s213 = smul.u32 32, %s21
      %p214 = scmp.lt.s32.totalorder %s20, 1
      %s215 = scalar_select %p214, %s20, 1
      %p216 = scmp.lt.s32.totalorder %s213, 31
      %s217 = scalar_select %p216, %s213, 31
      %s218 = smul.addr %s215, 32
      %s219 = sadd.s32 %s217, %s218
      %s220 = smul.addr %s219, 4
      %s221 = scalar_lea.vmem %s2, %s220
      %p222 = pneg %p128
      %p223 = pneg %p125
      %p224 = scmp.lt.s32.totalorder %s20, 1
      %s225 = scalar_select %p224, %s20, 1
      %p226 = scmp.lt.s32.totalorder %s21, 0
      %s227 = scalar_select %p226, %s21, 0
      %s228 = sadd.s32 %s227, %s225
      %s229 = smul.addr %s228, 8
      %s230 = scalar_lea.vmem %s3, %s229
      %p231 = pneg %p156
      %p232 = pneg %p153
      %p233 = scmp.lt.s32.totalorder %s20, 1
      %s234 = scalar_select %p233, %s20, 1
      %p235 = scmp.lt.s32.totalorder %s21, 0
      %s236 = scalar_select %p235, %s21, 0
      %s237 = sadd.s32 %s236, %s234
      %s238 = smul.addr %s237, 8
      %s239 = scalar_lea.vmem %s4, %s238
      %s240 = smul.u32 32, %s21
      %p241 = scmp.lt.s32.totalorder %s20, 1
      %s242 = scalar_select %p241, %s20, 1
      %p243 = scmp.lt.s32.totalorder %s240, 31
      %s244 = scalar_select %p243, %s240, 31
      %s245 = smul.addr %s242, 32
      %s246 = sadd.s32 %s244, %s245
      %s247 = smul.addr %s246, 4
      %s248 = scalar_lea.vmem %s0, %s247
      %s249 = smul.u32 32, %s21
      %s250 = smul.u32 32, %s21
      %p251 = scmp.lt.s32.totalorder %s20, 1
      %s252 = scalar_select %p251, %s20, 1
      %p253 = scmp.lt.s32.totalorder %s250, 31
      %s254 = scalar_select %p253, %s250, 31
      %s255 = smul.addr %s252, 32
      %s256 = sadd.s32 %s254, %s255
      %s257 = smul.addr %s256, 4
      %s258 = scalar_lea.vmem %s2, %s257
      %s259 = smul.u32 32, %s21
      %p260 = scmp.lt.s32.totalorder %s20, 1
      %s261 = scalar_select %p260, %s20, 1
      %p262 = scmp.lt.s32.totalorder %s21, 0
      %s263 = scalar_select %p262, %s21, 0
      %s264 = sadd.s32 %s263, %s261
      %s265 = smul.addr %s264, 8
      %s266 = scalar_lea.vmem %s3, %s265
      %p267 = scmp.lt.s32.totalorder %s20, 1
      %s268 = scalar_select %p267, %s20, 1
      %p269 = scmp.lt.s32.totalorder %s21, 0
      %s270 = scalar_select %p269, %s21, 0
      %s271 = sadd.s32 %s270, %s268
      %s272 = smul.addr %s271, 8
      %s273 = scalar_lea.vmem %s4, %s272
      %v275 = vld [vmem:[%s248] sm:$0xf]
      %v276 = vld [vmem:[%s248 + $0x4] sm:$0xf]
      %v277 = vld [vmem:[%s248 + $0x8] sm:$0xf]
      %v278 = vld [vmem:[%s248 + $0xc] sm:$0xf]
      %v279 = vld [vmem:[%s248 + $0x10] sm:$0xf]
      %v280 = vld [vmem:[%s248 + $0x14] sm:$0xf]
      %v281 = vld [vmem:[%s248 + $0x18] sm:$0xf]
      %v282 = vld [vmem:[%s248 + $0x1c] sm:$0xf]
      %v283 = vld [vmem:[%s248 + $0x20] sm:$0xf]
      %v284 = vld [vmem:[%s248 + $0x24] sm:$0xf]
      %v285 = vld [vmem:[%s248 + $0x28] sm:$0xf]
      %v286 = vld [vmem:[%s248 + $0x2c] sm:$0xf]
      %v287 = vld [vmem:[%s248 + $0x30] sm:$0xf]
      %v288 = vld [vmem:[%s248 + $0x34] sm:$0xf]
      %v289 = vld [vmem:[%s248 + $0x38] sm:$0xf]
      %v290 = vld [vmem:[%s248 + $0x3c] sm:$0xf]
      %v291 = vld [vmem:[%s248 + $0x40] sm:$0xf]
      %v292 = vld [vmem:[%s248 + $0x44] sm:$0xf]
      %v293 = vld [vmem:[%s248 + $0x48] sm:$0xf]
      %v294 = vld [vmem:[%s248 + $0x4c] sm:$0xf]
      %v295 = vld [vmem:[%s248 + $0x50] sm:$0xf]
      %v296 = vld [vmem:[%s248 + $0x54] sm:$0xf]
      %v297 = vld [vmem:[%s248 + $0x58] sm:$0xf]
      %v298 = vld [vmem:[%s248 + $0x5c] sm:$0xf]
      %v299 = vld [vmem:[%s248 + $0x60] sm:$0xf]
      %v300 = vld [vmem:[%s248 + $0x64] sm:$0xf]
      %v301 = vld [vmem:[%s248 + $0x68] sm:$0xf]
      %v302 = vld [vmem:[%s248 + $0x6c] sm:$0xf]
      %v303 = vld [vmem:[%s248 + $0x70] sm:$0xf]
      %v304 = vld [vmem:[%s248 + $0x74] sm:$0xf]
      %v305 = vld [vmem:[%s248 + $0x78] sm:$0xf]
      %v306 = vld [vmem:[%s248 + $0x7c] sm:$0xf]
      %v307 = vld [vmem:[%s1] sm:$0xf]
      %v308 = vld [vmem:[%s1 + $0x4] sm:$0xf]
      %v309 = vld [vmem:[%s1 + $0x8] sm:$0xf]
      %v310 = vld [vmem:[%s1 + $0xc] sm:$0xf]
      %v311 = vld [vmem:[%s1 + $0x10] sm:$0xf]
      %v312 = vld [vmem:[%s1 + $0x14] sm:$0xf]
      %v313 = vld [vmem:[%s1 + $0x18] sm:$0xf]
      %v314 = vld [vmem:[%s1 + $0x1c] sm:$0xf]
      %v315 = vld [vmem:[%s1 + $0x20] sm:$0xf]
      %v316 = vld [vmem:[%s1 + $0x24] sm:$0xf]
      %v317 = vld [vmem:[%s1 + $0x28] sm:$0xf]
      %v318 = vld [vmem:[%s1 + $0x2c] sm:$0xf]
      %v319 = vld [vmem:[%s1 + $0x30] sm:$0xf]
      %v320 = vld [vmem:[%s1 + $0x34] sm:$0xf]
      %v321 = vld [vmem:[%s1 + $0x38] sm:$0xf]
      %v322 = vld [vmem:[%s1 + $0x3c] sm:$0xf]
      %v355 = vunpack.c.l.b16 %v275
      %v356 = vunpack.c.l.b16 %v276
      %v357 = vunpack.c.l.b16 %v277
      %v358 = vunpack.c.l.b16 %v278
      %v359 = vunpack.c.l.b16 %v279
      %v360 = vunpack.c.l.b16 %v280
      %v361 = vunpack.c.l.b16 %v281
      %v362 = vunpack.c.l.b16 %v282
      %v363 = vunpack.c.l.b16 %v283
      %v364 = vunpack.c.l.b16 %v284
      %v365 = vunpack.c.l.b16 %v285
      %v366 = vunpack.c.l.b16 %v286
      %v367 = vunpack.c.l.b16 %v287
      %v368 = vunpack.c.l.b16 %v288
      %v369 = vunpack.c.l.b16 %v289
      %v370 = vunpack.c.l.b16 %v290
      %v371 = vunpack.c.l.b16 %v291
      %v372 = vunpack.c.l.b16 %v292
      %v373 = vunpack.c.l.b16 %v293
      %v374 = vunpack.c.l.b16 %v294
      %v375 = vunpack.c.l.b16 %v295
      %v376 = vunpack.c.l.b16 %v296
      %v377 = vunpack.c.l.b16 %v297
      %v378 = vunpack.c.l.b16 %v298
      %v379 = vunpack.c.l.b16 %v299
      %v380 = vunpack.c.l.b16 %v300
      %v381 = vunpack.c.l.b16 %v301
      %v382 = vunpack.c.l.b16 %v302
      %v383 = vunpack.c.l.b16 %v303
      %v384 = vunpack.c.l.b16 %v304
      %v385 = vunpack.c.l.b16 %v305
      %v386 = vunpack.c.l.b16 %v306
      %v387 = vpack.c.b16 %v356, %v355
      %v388 = vpack.c.b16 %v358, %v357
      %v389 = vpack.c.b16 %v360, %v359
      %v390 = vpack.c.b16 %v362, %v361
      %v391 = vpack.c.b16 %v364, %v363
      %v392 = vpack.c.b16 %v366, %v365
      %v393 = vpack.c.b16 %v368, %v367
      %v394 = vpack.c.b16 %v370, %v369
      %v395 = vpack.c.b16 %v372, %v371
      %v396 = vpack.c.b16 %v374, %v373
      %v397 = vpack.c.b16 %v376, %v375
      %v398 = vpack.c.b16 %v378, %v377
      %v399 = vpack.c.b16 %v380, %v379
      %v400 = vpack.c.b16 %v382, %v381
      %v401 = vpack.c.b16 %v384, %v383
      %v402 = vpack.c.b16 %v386, %v385
      %v435 = vunpack.c.l.b16 %v307
      %v436 = vunpack.c.l.b16 %v308
      %v437 = vunpack.c.l.b16 %v309
      %v438 = vunpack.c.l.b16 %v310
      %v439 = vunpack.c.l.b16 %v311
      %v440 = vunpack.c.l.b16 %v312
      %v441 = vunpack.c.l.b16 %v313
      %v442 = vunpack.c.l.b16 %v314
      %v443 = vunpack.c.l.b16 %v315
      %v444 = vunpack.c.l.b16 %v316
      %v445 = vunpack.c.l.b16 %v317
      %v446 = vunpack.c.l.b16 %v318
      %v447 = vunpack.c.l.b16 %v319
      %v448 = vunpack.c.l.b16 %v320
      %v449 = vunpack.c.l.b16 %v321
      %v450 = vunpack.c.l.b16 %v322
      %v451 = vpack.c.b16 %v436, %v435
      %v452 = vpack.c.b16 %v438, %v437
      %v453 = vpack.c.b16 %v440, %v439
      %v454 = vpack.c.b16 %v442, %v441
      %v455 = vpack.c.b16 %v444, %v443
      %v456 = vpack.c.b16 %v446, %v445
      %v457 = vpack.c.b16 %v448, %v447
      %v458 = vpack.c.b16 %v450, %v449
      %467 = vmatprep.subr.bf16.mxu0 0
      %468 = vmatpush1.bf16.msra.mxu0 %v451
      %469 = vmatprep.subr.bf16.mxu0 0
      %470 = vmatpush1.bf16.msra.mxu0 %v452
      %471 = vmatprep.subr.bf16.mxu0 0
      %472 = vmatpush1.bf16.msra.mxu0 %v453
      %473 = vmatprep.subr.bf16.mxu0 0
      %474 = vmatpush1.bf16.msra.mxu0 %v454
      %475 = vmatprep.subr.bf16.mxu0 0
      %476 = vmatpush1.bf16.msra.mxu0 %v455
      %477 = vmatprep.subr.bf16.mxu0 0
      %478 = vmatpush1.bf16.msra.mxu0 %v456
      %479 = vmatprep.subr.bf16.mxu0 0
      %480 = vmatpush1.bf16.msra.mxu0 %v457
      %481 = vmatprep.subr.bf16.mxu0 0
      %482 = vmatpush1.bf16.msra.mxu0 %v458
      %483 = vmatprep.subr.bf16.mxu0 0
      %484 = vmatpush1.bf16.msra.mxu0 0
      %485 = vmatprep.subr.bf16.mxu0 0
      %486 = vmatpush1.bf16.msra.mxu0 0
      %487 = vmatprep.subr.bf16.mxu0 0
      %488 = vmatpush1.bf16.msra.mxu0 0
      %489 = vmatprep.subr.bf16.mxu0 0
      %490 = vmatpush1.bf16.msra.mxu0 0
      %491 = vmatprep.subr.bf16.mxu0 0
      %492 = vmatpush1.bf16.msra.mxu0 0
      %493 = vmatprep.subr.bf16.mxu0 0
      %494 = vmatpush1.bf16.msra.mxu0 0
      %495 = vmatprep.subr.bf16.mxu0 0
      %496 = vmatpush1.bf16.msra.mxu0 0
      %497 = vmatprep.subr.bf16.mxu0 0
      %498 = vmatpush1.bf16.msra.mxu0 0
      %499 = vmatprep.mubr.bf16.mxu0 0
      %500 = vmatmul.mubr.bf16.gmra.mrb[0].mxu0 %v387
      %v501 = vpop.f32.mrb[0].mxu0
      %v502 = vadd.f32 0.0, %v501
      %v503 = vpop.f32.mrb[0].mxu0
      %v504 = vpop.f32.mrb[0].mxu0
      %v505 = vadd.f32 0.0, %v504
      %v506 = vpop.f32.mrb[0].mxu0
      %507 = vmatprep.mubr.bf16.mxu0 0
      %508 = vmatmul.mubr.bf16.gmra.mrb[0].mxu0 %v388
      %v509 = vpop.f32.mrb[0].mxu0
      %v510 = vadd.f32 0.0, %v509
      %v511 = vpop.f32.mrb[0].mxu0
      %v512 = vpop.f32.mrb[0].mxu0
      %v513 = vadd.f32 0.0, %v512
      %v514 = vpop.f32.mrb[0].mxu0
      %515 = vmatprep.mubr.bf16.mxu0 0
      %516 = vmatmul.mubr.bf16.gmra.mrb[0].mxu0 %v389
      %v517 = vpop.f32.mrb[0].mxu0
      %v518 = vadd.f32 0.0, %v517
      %v519 = vpop.f32.mrb[0].mxu0
      %v520 = vpop.f32.mrb[0].mxu0
      %v521 = vadd.f32 0.0, %v520
      %v522 = vpop.f32.mrb[0].mxu0
      %523 = vmatprep.mubr.bf16.mxu0 0
      %524 = vmatmul.mubr.bf16.gmra.mrb[0].mxu0 %v390
      %v525 = vpop.f32.mrb[0].mxu0
      %v526 = vadd.f32 0.0, %v525
      %v527 = vpop.f32.mrb[0].mxu0
      %v528 = vpop.f32.mrb[0].mxu0
      %v529 = vadd.f32 0.0, %v528
      %v530 = vpop.f32.mrb[0].mxu0
      %531 = vmatprep.mubr.bf16.mxu0 0
      %532 = vmatmul.mubr.bf16.gmra.mrb[0].mxu0 %v391
      %v533 = vpop.f32.mrb[0].mxu0
      %v534 = vadd.f32 0.0, %v533
      %v535 = vpop.f32.mrb[0].mxu0
      %v536 = vpop.f32.mrb[0].mxu0
      %v537 = vadd.f32 0.0, %v536
      %v538 = vpop.f32.mrb[0].mxu0
      %539 = vmatprep.mubr.bf16.mxu0 0
      %540 = vmatmul.mubr.bf16.gmra.mrb[0].mxu0 %v392
      %v541 = vpop.f32.mrb[0].mxu0
      %v542 = vadd.f32 0.0, %v541
      %v543 = vpop.f32.mrb[0].mxu0
      %v544 = vpop.f32.mrb[0].mxu0
      %v545 = vadd.f32 0.0, %v544
      %v546 = vpop.f32.mrb[0].mxu0
      %547 = vmatprep.mubr.bf16.mxu0 0
      %548 = vmatmul.mubr.bf16.gmra.mrb[0].mxu0 %v393
      %v549 = vpop.f32.mrb[0].mxu0
      %v550 = vadd.f32 0.0, %v549
      %v551 = vpop.f32.mrb[0].mxu0
      %v552 = vpop.f32.mrb[0].mxu0
      %v553 = vadd.f32 0.0, %v552
      %v554 = vpop.f32.mrb[0].mxu0
      %555 = vmatprep.mubr.bf16.mxu0 0
      %556 = vmatmul.mubr.bf16.gmra.mrb[0].mxu0 %v394
      %v557 = vpop.f32.mrb[0].mxu0
      %v558 = vadd.f32 0.0, %v557
      %v559 = vpop.f32.mrb[0].mxu0
      %v560 = vpop.f32.mrb[0].mxu0
      %v561 = vadd.f32 0.0, %v560
      %v562 = vpop.f32.mrb[0].mxu0
      %563 = vmatprep.mubr.bf16.mxu0 0
      %564 = vmatmul.mubr.bf16.gmra.mrb[0].mxu0 %v395
      %v565 = vpop.f32.mrb[0].mxu0
      %v566 = vadd.f32 0.0, %v565
      %v567 = vpop.f32.mrb[0].mxu0
      %v568 = vpop.f32.mrb[0].mxu0
      %v569 = vadd.f32 0.0, %v568
      %v570 = vpop.f32.mrb[0].mxu0
      %571 = vmatprep.mubr.bf16.mxu0 0
      %572 = vmatmul.mubr.bf16.gmra.mrb[0].mxu0 %v396
      %v573 = vpop.f32.mrb[0].mxu0
      %v574 = vadd.f32 0.0, %v573
      %v575 = vpop.f32.mrb[0].mxu0
      %v576 = vpop.f32.mrb[0].mxu0
      %v577 = vadd.f32 0.0, %v576
      %v578 = vpop.f32.mrb[0].mxu0
      %579 = vmatprep.mubr.bf16.mxu0 0
      %580 = vmatmul.mubr.bf16.gmra.mrb[0].mxu0 %v397
      %v581 = vpop.f32.mrb[0].mxu0
      %v582 = vadd.f32 0.0, %v581
      %v583 = vpop.f32.mrb[0].mxu0
      %v584 = vpop.f32.mrb[0].mxu0
      %v585 = vadd.f32 0.0, %v584
      %v586 = vpop.f32.mrb[0].mxu0
      %587 = vmatprep.mubr.bf16.mxu0 0
      %588 = vmatmul.mubr.bf16.gmra.mrb[0].mxu0 %v398
      %v589 = vpop.f32.mrb[0].mxu0
      %v590 = vadd.f32 0.0, %v589
      %v591 = vpop.f32.mrb[0].mxu0
      %v592 = vpop.f32.mrb[0].mxu0
      %v593 = vadd.f32 0.0, %v592
      %v594 = vpop.f32.mrb[0].mxu0
      %595 = vmatprep.mubr.bf16.mxu0 0
      %596 = vmatmul.mubr.bf16.gmra.mrb[0].mxu0 %v399
      %v597 = vpop.f32.mrb[0].mxu0
      %v598 = vadd.f32 0.0, %v597
      %v599 = vpop.f32.mrb[0].mxu0
      %v600 = vpop.f32.mrb[0].mxu0
      %v601 = vadd.f32 0.0, %v600
      %v602 = vpop.f32.mrb[0].mxu0
      %603 = vmatprep.mubr.bf16.mxu0 0
      %604 = vmatmul.mubr.bf16.gmra.mrb[0].mxu0 %v400
      %v605 = vpop.f32.mrb[0].mxu0
      %v606 = vadd.f32 0.0, %v605
      %v607 = vpop.f32.mrb[0].mxu0
      %v608 = vpop.f32.mrb[0].mxu0
      %v609 = vadd.f32 0.0, %v608
      %v610 = vpop.f32.mrb[0].mxu0
      %611 = vmatprep.mubr.bf16.mxu0 0
      %612 = vmatmul.mubr.bf16.gmra.mrb[0].mxu0 %v401
      %v613 = vpop.f32.mrb[0].mxu0
      %v614 = vadd.f32 0.0, %v613
      %v615 = vpop.f32.mrb[0].mxu0
      %v616 = vpop.f32.mrb[0].mxu0
      %v617 = vadd.f32 0.0, %v616
      %v618 = vpop.f32.mrb[0].mxu0
      %619 = vmatprep.mubr.bf16.mxu0 0
      %620 = vmatmul.mubr.bf16.gmra.mrb[0].mxu0 %v402
      %v621 = vpop.f32.mrb[0].mxu0
      %v622 = vadd.f32 0.0, %v621
      %v623 = vpop.f32.mrb[0].mxu0
      %v624 = vpop.f32.mrb[0].mxu0
      %v625 = vadd.f32 0.0, %v624
      %v626 = vpop.f32.mrb[0].mxu0
      %627 = vdwg.mxu0
      %v628 = vpack.c.bf16 %v505, %v502
      %v629 = vpack.c.bf16 %v513, %v510
      %v630 = vpack.c.bf16 %v521, %v518
      %v631 = vpack.c.bf16 %v529, %v526
      %v632 = vpack.c.bf16 %v537, %v534
      %v633 = vpack.c.bf16 %v545, %v542
      %v634 = vpack.c.bf16 %v553, %v550
      %v635 = vpack.c.bf16 %v561, %v558
      %v636 = vpack.c.bf16 %v569, %v566
      %v637 = vpack.c.bf16 %v577, %v574
      %v638 = vpack.c.bf16 %v585, %v582
      %v639 = vpack.c.bf16 %v593, %v590
      %v640 = vpack.c.bf16 %v601, %v598
      %v641 = vpack.c.bf16 %v609, %v606
      %v642 = vpack.c.bf16 %v617, %v614
      %v643 = vpack.c.bf16 %v625, %v622
      %v660 = vunpack.c.l.b16 %v628
      %v661 = vunpack.c.h.b16 %v628
      %v662 = vunpack.c.l.b16 %v629
      %v663 = vunpack.c.h.b16 %v629
      %v664 = vunpack.c.l.b16 %v630
      %v665 = vunpack.c.h.b16 %v630
      %v666 = vunpack.c.l.b16 %v631
      %v667 = vunpack.c.h.b16 %v631
      %v668 = vunpack.c.l.b16 %v632
      %v669 = vunpack.c.h.b16 %v632
      %v670 = vunpack.c.l.b16 %v633
      %v671 = vunpack.c.h.b16 %v633
      %v672 = vunpack.c.l.b16 %v634
      %v673 = vunpack.c.h.b16 %v634
      %v674 = vunpack.c.l.b16 %v635
      %v675 = vunpack.c.h.b16 %v635
      %v676 = vunpack.c.l.b16 %v636
      %v677 = vunpack.c.h.b16 %v636
      %v678 = vunpack.c.l.b16 %v637
      %v679 = vunpack.c.h.b16 %v637
      %v680 = vunpack.c.l.b16 %v638
      %v681 = vunpack.c.h.b16 %v638
      %v682 = vunpack.c.l.b16 %v639
      %v683 = vunpack.c.h.b16 %v639
      %v684 = vunpack.c.l.b16 %v640
      %v685 = vunpack.c.h.b16 %v640
      %v686 = vunpack.c.l.b16 %v641
      %v687 = vunpack.c.h.b16 %v641
      %v688 = vunpack.c.l.b16 %v642
      %v689 = vunpack.c.h.b16 %v642
      %v690 = vunpack.c.l.b16 %v643
      %v691 = vunpack.c.h.b16 %v643
      %v692 = vpack.c.b16 %v660, %v660
      %v693 = vpack.c.b16 %v661, %v661
      %v694 = vpack.c.b16 %v662, %v662
      %v695 = vpack.c.b16 %v663, %v663
      %v696 = vpack.c.b16 %v664, %v664
      %v697 = vpack.c.b16 %v665, %v665
      %v698 = vpack.c.b16 %v666, %v666
      %v699 = vpack.c.b16 %v667, %v667
      %v700 = vpack.c.b16 %v668, %v668
      %v701 = vpack.c.b16 %v669, %v669
      %v702 = vpack.c.b16 %v670, %v670
      %v703 = vpack.c.b16 %v671, %v671
      %v704 = vpack.c.b16 %v672, %v672
      %v705 = vpack.c.b16 %v673, %v673
      %v706 = vpack.c.b16 %v674, %v674
      %v707 = vpack.c.b16 %v675, %v675
      %v708 = vpack.c.b16 %v676, %v676
      %v709 = vpack.c.b16 %v677, %v677
      %v710 = vpack.c.b16 %v678, %v678
      %v711 = vpack.c.b16 %v679, %v679
      %v712 = vpack.c.b16 %v680, %v680
      %v713 = vpack.c.b16 %v681, %v681
      %v714 = vpack.c.b16 %v682, %v682
      %v715 = vpack.c.b16 %v683, %v683
      %v716 = vpack.c.b16 %v684, %v684
      %v717 = vpack.c.b16 %v685, %v685
      %v718 = vpack.c.b16 %v686, %v686
      %v719 = vpack.c.b16 %v687, %v687
      %v720 = vpack.c.b16 %v688, %v688
      %v721 = vpack.c.b16 %v689, %v689
      %v722 = vpack.c.b16 %v690, %v690
      %v723 = vpack.c.b16 %v691, %v691
      %756 = vst [vmem:[%s258] sm:$0xf] %v692
      %757 = vst [vmem:[%s258 + $0x4] sm:$0xf] %v693
      %758 = vst [vmem:[%s258 + $0x8] sm:$0xf] %v694
      %759 = vst [vmem:[%s258 + $0xc] sm:$0xf] %v695
      %760 = vst [vmem:[%s258 + $0x10] sm:$0xf] %v696
      %761 = vst [vmem:[%s258 + $0x14] sm:$0xf] %v697
      %762 = vst [vmem:[%s258 + $0x18] sm:$0xf] %v698
      %763 = vst [vmem:[%s258 + $0x1c] sm:$0xf] %v699
      %764 = vst [vmem:[%s258 + $0x20] sm:$0xf] %v700
      %765 = vst [vmem:[%s258 + $0x24] sm:$0xf] %v701
      %766 = vst [vmem:[%s258 + $0x28] sm:$0xf] %v702
      %767 = vst [vmem:[%s258 + $0x2c] sm:$0xf] %v703
      %768 = vst [vmem:[%s258 + $0x30] sm:$0xf] %v704
      %769 = vst [vmem:[%s258 + $0x34] sm:$0xf] %v705
      %770 = vst [vmem:[%s258 + $0x38] sm:$0xf] %v706
      %771 = vst [vmem:[%s258 + $0x3c] sm:$0xf] %v707
      %772 = vst [vmem:[%s258 + $0x40] sm:$0xf] %v708
      %773 = vst [vmem:[%s258 + $0x44] sm:$0xf] %v709
      %774 = vst [vmem:[%s258 + $0x48] sm:$0xf] %v710
      %775 = vst [vmem:[%s258 + $0x4c] sm:$0xf] %v711
      %776 = vst [vmem:[%s258 + $0x50] sm:$0xf] %v712
      %777 = vst [vmem:[%s258 + $0x54] sm:$0xf] %v713
      %778 = vst [vmem:[%s258 + $0x58] sm:$0xf] %v714
      %779 = vst [vmem:[%s258 + $0x5c] sm:$0xf] %v715
      %780 = vst [vmem:[%s258 + $0x60] sm:$0xf] %v716
      %781 = vst [vmem:[%s258 + $0x64] sm:$0xf] %v717
      %782 = vst [vmem:[%s258 + $0x68] sm:$0xf] %v718
      %783 = vst [vmem:[%s258 + $0x6c] sm:$0xf] %v719
      %784 = vst [vmem:[%s258 + $0x70] sm:$0xf] %v720
      %785 = vst [vmem:[%s258 + $0x74] sm:$0xf] %v721
      %786 = vst [vmem:[%s258 + $0x78] sm:$0xf] %v722
      %787 = vst [vmem:[%s258 + $0x7c] sm:$0xf] %v723
      %v788 = vadd.f32 %v502, %v505
      %v789 = vadd.f32 %v788, %v510
      %v790 = vadd.f32 %v789, %v513
      %v791 = vadd.f32 %v790, %v518
      %v792 = vadd.f32 %v791, %v521
      %v793 = vadd.f32 %v792, %v526
      %v794 = vadd.f32 %v793, %v529
      %v795 = vadd.f32 %v794, %v534
      %v796 = vadd.f32 %v795, %v537
      %v797 = vadd.f32 %v796, %v542
      %v798 = vadd.f32 %v797, %v545
      %v799 = vadd.f32 %v798, %v550
      %v800 = vadd.f32 %v799, %v553
      %v801 = vadd.f32 %v800, %v558
      %v802 = vadd.f32 %v801, %v561
      %v803 = vadd.f32 %v802, %v566
      %v804 = vadd.f32 %v803, %v569
      %v805 = vadd.f32 %v804, %v574
      %v806 = vadd.f32 %v805, %v577
      %v807 = vadd.f32 %v806, %v582
      %v808 = vadd.f32 %v807, %v585
      %v809 = vadd.f32 %v808, %v590
      %v810 = vadd.f32 %v809, %v593
      %v811 = vadd.f32 %v810, %v598
      %v812 = vadd.f32 %v811, %v601
      %v813 = vadd.f32 %v812, %v606
      %v814 = vadd.f32 %v813, %v609
      %v815 = vadd.f32 %v814, %v614
      %v816 = vadd.f32 %v815, %v617
      %v817 = vadd.f32 %v816, %v622
      %v818 = vadd.f32 %v817, %v625
      %v819 = vrot.slane %v818, 4
      %v820 = vadd.f32 %v818, %v819
      %v821 = vrot.slane %v820, 2
      %v822 = vadd.f32 %v820, %v821
      %v823 = vrot.slane %v822, 1
      %v824 = vadd.f32 %v822, %v823
      %v825 = vmul.f32 %v502, %v502
      %v826 = vmul.f32 %v505, %v505
      %v827 = vmul.f32 %v510, %v510
      %v828 = vmul.f32 %v513, %v513
      %v829 = vmul.f32 %v518, %v518
      %v830 = vmul.f32 %v521, %v521
      %v831 = vmul.f32 %v526, %v526
      %v832 = vmul.f32 %v529, %v529
      %v833 = vmul.f32 %v534, %v534
      %v834 = vmul.f32 %v537, %v537
      %v835 = vmul.f32 %v542, %v542
      %v836 = vmul.f32 %v545, %v545
      %v837 = vmul.f32 %v550, %v550
      %v838 = vmul.f32 %v553, %v553
      %v839 = vmul.f32 %v558, %v558
      %v840 = vmul.f32 %v561, %v561
      %v841 = vmul.f32 %v566, %v566
      %v842 = vmul.f32 %v569, %v569
      %v843 = vmul.f32 %v574, %v574
      %v844 = vmul.f32 %v577, %v577
      %v845 = vmul.f32 %v582, %v582
      %v846 = vmul.f32 %v585, %v585
      %v847 = vmul.f32 %v590, %v590
      %v848 = vmul.f32 %v593, %v593
      %v849 = vmul.f32 %v598, %v598
      %v850 = vmul.f32 %v601, %v601
      %v851 = vmul.f32 %v606, %v606
      %v852 = vmul.f32 %v609, %v609
      %v853 = vmul.f32 %v614, %v614
      %v854 = vmul.f32 %v617, %v617
      %v855 = vmul.f32 %v622, %v622
      %v856 = vmul.f32 %v625, %v625
      %v857 = vadd.f32 %v825, %v826
      %v858 = vadd.f32 %v857, %v827
      %v859 = vadd.f32 %v858, %v828
      %v860 = vadd.f32 %v859, %v829
      %v861 = vadd.f32 %v860, %v830
      %v862 = vadd.f32 %v861, %v831
      %v863 = vadd.f32 %v862, %v832
      %v864 = vadd.f32 %v863, %v833
      %v865 = vadd.f32 %v864, %v834
      %v866 = vadd.f32 %v865, %v835
      %v867 = vadd.f32 %v866, %v836
      %v868 = vadd.f32 %v867, %v837
      %v869 = vadd.f32 %v868, %v838
      %v870 = vadd.f32 %v869, %v839
      %v871 = vadd.f32 %v870, %v840
      %v872 = vadd.f32 %v871, %v841
      %v873 = vadd.f32 %v872, %v842
      %v874 = vadd.f32 %v873, %v843
      %v875 = vadd.f32 %v874, %v844
      %v876 = vadd.f32 %v875, %v845
      %v877 = vadd.f32 %v876, %v846
      %v878 = vadd.f32 %v877, %v847
      %v879 = vadd.f32 %v878, %v848
      %v880 = vadd.f32 %v879, %v849
      %v881 = vadd.f32 %v880, %v850
      %v882 = vadd.f32 %v881, %v851
      %v883 = vadd.f32 %v882, %v852
      %v884 = vadd.f32 %v883, %v853
      %v885 = vadd.f32 %v884, %v854
      %v886 = vadd.f32 %v885, %v855
      %v887 = vadd.f32 %v886, %v856
      %v888 = vrot.slane %v887, 4
      %v889 = vadd.f32 %v887, %v888
      %v890 = vrot.slane %v889, 2
      %v891 = vadd.f32 %v889, %v890
      %v892 = vrot.slane %v891, 1
      %v893 = vadd.f32 %v891, %v892
      %894 = vst [vmem:[%s266] sm:$0xff] %v824
      %895 = vst [vmem:[%s273] sm:$0xff] %v893
      %s896 = smul.u32 32, %s21
      %p897 = scmp.lt.s32.totalorder %s20, 1
      %s898 = scalar_select %p897, %s20, 1
      %p899 = scmp.lt.s32.totalorder %s896, 31
      %s900 = scalar_select %p899, %s896, 31
      %s901 = smul.addr %s898, 32
      %s902 = sadd.s32 %s900, %s901
      %s903 = smul.addr %s902, 4
      %s904 = scalar_lea.vmem %s2, %s903
      %p905 = scmp.lt.s32.totalorder %s20, 1
      %s906 = scalar_select %p905, %s20, 1
      %p907 = scmp.lt.s32.totalorder %s21, 0
      %s908 = scalar_select %p907, %s21, 0
      %s909 = sadd.s32 %s908, %s906
      %s910 = smul.addr %s909, 8
      %s911 = scalar_lea.vmem %s3, %s910
      %p912 = scmp.lt.s32.totalorder %s20, 1
      %s913 = scalar_select %p912, %s20, 1
      %p914 = scmp.lt.s32.totalorder %s21, 0
      %s915 = scalar_select %p914, %s21, 0
      %s916 = sadd.s32 %s915, %s913
      %s917 = smul.addr %s916, 8
      %s918 = scalar_lea.vmem %s4, %s917
      // Predicated region
      $region29: #{conv_bn_relu.2} parent=27 // pred_check
        %p919 = pneg %p97
      $region30: #{conv_bn_relu.2} parent=27 // pred_check_branch
        %921 = sbr.rel (%p919) target = $region32
      $region31: #{conv_bn_relu.2} parent=27 // pred_region
        %s922 = smul.u32 32, %s21
      $region32: #{conv_bn_relu.2} parent=27 // pred_fallthru
        _
      // Predicated region
      $region33: #{conv_bn_relu.2} parent=27 // pred_check
        %p923 = pneg %p125
      $region34: #{conv_bn_relu.2} parent=27 // pred_check_branch
        %925 = sbr.rel (%p923) target = $region36
      $region35: #{conv_bn_relu.2} parent=27 // pred_region
        _
      $region36: #{conv_bn_relu.2} parent=27 // pred_fallthru
        _
      // Predicated region
      $region37: #{conv_bn_relu.2} parent=27 // pred_check
        %p926 = pneg %p153
      $region38: #{conv_bn_relu.2} parent=27 // pred_check_branch
        %928 = sbr.rel (%p926) target = $region40
      $region39: #{conv_bn_relu.2} parent=27 // pred_region
        _
      $region40: #{conv_bn_relu.2} parent=27 // pred_fallthru
        _
    $region28: #{conv_bn_relu.2} parent=5 // pred_fallthru
      _
    %p929 = scmp.le.s32.totalorder 2, %s11
    // Predicated region
    $region41: #{conv_bn_relu.2} parent=5 // pred_check
      %p930 = pneg %p929
    $region42: #{conv_bn_relu.2} parent=5 // pred_check_branch
      %932 = sbr.rel (%p930) target = $region44
    $region43: #{conv_bn_relu.2} parent=5 // pred_region
      %s933 = ssub.s32 %s11, 2
      // Predicated region
      $region45: #{conv_bn_relu.2} parent=43 // pred_check
        %p934 = pneg %p103
      $region46: #{conv_bn_relu.2} parent=43 // pred_check_branch
        %936 = sbr.rel (%p934) target = $region48
      $region47: #{conv_bn_relu.2} parent=43 // pred_region
        %s937 = smul.u32 32, %s23
        %p938 = scmp.lt.s32.totalorder %s22, 1
        %s939 = scalar_select %p938, %s22, 1
        %p940 = scmp.lt.s32.totalorder %s937, 31
        %s941 = scalar_select %p940, %s937, 31
        %s942 = smul.addr %s939, 32
        %s943 = sadd.s32 %s941, %s942
        %s944 = smul.addr %s943, 4
        %s945 = scalar_lea.vmem %s2, %s944
      $region48: #{conv_bn_relu.2} parent=43 // pred_fallthru
        _
      // Predicated region
      $region49: #{conv_bn_relu.2} parent=43 // pred_check
        %p946 = pneg %p131
      $region50: #{conv_bn_relu.2} parent=43 // pred_check_branch
        %948 = sbr.rel (%p946) target = $region52
      $region51: #{conv_bn_relu.2} parent=43 // pred_region
        %p949 = scmp.lt.s32.totalorder %s22, 1
        %s950 = scalar_select %p949, %s22, 1
        %p951 = scmp.lt.s32.totalorder %s23, 0
        %s952 = scalar_select %p951, %s23, 0
        %s953 = sadd.s32 %s952, %s950
        %s954 = smul.addr %s953, 8
        %s955 = scalar_lea.vmem %s3, %s954
      $region52: #{conv_bn_relu.2} parent=43 // pred_fallthru
        _
      // Predicated region
      $region53: #{conv_bn_relu.2} parent=43 // pred_check
        %p956 = pneg %p159
      $region54: #{conv_bn_relu.2} parent=43 // pred_check_branch
        %958 = sbr.rel (%p956) target = $region56
      $region55: #{conv_bn_relu.2} parent=43 // pred_region
        %p959 = scmp.lt.s32.totalorder %s22, 1
        %s960 = scalar_select %p959, %s22, 1
        %p961 = scmp.lt.s32.totalorder %s23, 0
        %s962 = scalar_select %p961, %s23, 0
        %s963 = sadd.s32 %s962, %s960
        %s964 = smul.addr %s963, 8
        %s965 = scalar_lea.vmem %s4, %s964
      $region56: #{conv_bn_relu.2} parent=43 // pred_fallthru
        _
    $region44: #{conv_bn_relu.2} parent=5 // pred_fallthru
      _
  $region6: #{conv_bn_relu.2} parent=0 // loop_footer
    %s15 = sadd.s32 1, %s11
  $region7: #{conv_bn_relu.2} parent=0 // loop_footer_branch
    %10 = sbr.rel target = $region3
  $region8: #{conv_bn_relu.2} parent=0 // loop_exit
    _

</llo_original>
